<compile_context>
chip_gen: v7x
topology: tpu7x:2x2x1
jax: 0.10.0
libtpu: 0.0.40
codegen_flags: <defaults>
</compile_context>

<pallas_src>
import jax
import jax.numpy as jnp
from jax.experimental import pallas as pl
from jax.experimental.pallas import tpu as pltpu

INPUT_SIZE = 28 * 28      # 784
HIDDEN_SIZE = 28 * 14     # 392
OUTPUT_SIZE = 1


def mlp_kernel(x_ref, w1_ref, b1_ref, w2_ref, b2_ref, w3_ref, b3_ref, o_ref):
    # Layer 1: (TM, IN) @ (IN, H) on the MXU, bf16 inputs, f32 accumulation.
    x = x_ref[...].astype(jnp.bfloat16)
    h1 = jnp.dot(x, w1_ref[...], preferred_element_type=jnp.float32)
    h1 = jnp.maximum(h1 + b1_ref[...].astype(jnp.float32), 0.0)

    # Layer 2: (TM, H) @ (H, H), same recipe.
    h2 = jnp.dot(h1.astype(jnp.bfloat16), w2_ref[...],
                 preferred_element_type=jnp.float32)
    h2 = jnp.maximum(h2 + b2_ref[...].astype(jnp.float32), 0.0)

    # Layer 3 (fan_out == 1): VPU multiply + XLU lane reduce instead of a
    # 1-column MXU matmul (avoids an MXU push/pop for a single output column).
    w3_row = w3_ref[...].astype(jnp.float32)                    # (1, H)
    o_ref[...] = (jnp.sum(h2 * w3_row, axis=-1, keepdims=True)
                  + b3_ref[...].astype(jnp.float32))


def _mlp_pallas(x2d, params, block_m):
    """x2d: (B, INPUT_SIZE) float with B % block_m == 0. Returns (B, 1) f32."""
    w1, b1, w2, b2, w3, b3 = params
    B = x2d.shape[0]
    grid_b = B // block_m

    return pl.pallas_call(
        mlp_kernel,
        out_shape=jax.ShapeDtypeStruct((B, OUTPUT_SIZE), jnp.float32),
        grid=(grid_b,),
        in_specs=[
            pl.BlockSpec((block_m, INPUT_SIZE), lambda i: (i, 0)),
            # Weights/biases: same block every grid step -> VMEM-resident.
            pl.BlockSpec((INPUT_SIZE, HIDDEN_SIZE), lambda i: (0, 0)),
            pl.BlockSpec((1, HIDDEN_SIZE), lambda i: (0, 0)),
            pl.BlockSpec((HIDDEN_SIZE, HIDDEN_SIZE), lambda i: (0, 0)),
            pl.BlockSpec((1, HIDDEN_SIZE), lambda i: (0, 0)),
            pl.BlockSpec((1, HIDDEN_SIZE), lambda i: (0, 0)),
            pl.BlockSpec((1, 1), lambda i: (0, 0)),
        ],
        out_specs=pl.BlockSpec((block_m, OUTPUT_SIZE), lambda i: (i, 0)),
        compiler_params=pltpu.CompilerParams(
            dimension_semantics=("parallel",)),  # v7x: shard batch over 2 TCs
    )(x2d, w1, b1, w2, b2, w3, b3)


def mlp_forward_batched(xb, params, block_m=512):
    """xb: (B, ...) where each sample flattens to INPUT_SIZE. Returns (B, 1)."""
    B = xb.shape[0]
    # Keep bf16 inputs as-is (halves input DMA); otherwise use f32.
    in_dtype = jnp.bfloat16 if xb.dtype == jnp.bfloat16 else jnp.float32
    x2d = xb.reshape(B, INPUT_SIZE).astype(in_dtype)
    if B <= block_m:
        return _mlp_pallas(x2d, params, block_m=B)
    # Pad batch up to a multiple of block_m, then slice the result.
    pad = (-B) % block_m
    if pad:
        x2d = jnp.concatenate(
            [x2d, jnp.zeros((pad, INPUT_SIZE), in_dtype)], axis=0)
    out = _mlp_pallas(x2d, params, block_m=block_m)
    return out[:B]


def mlp_forward(x, params):
    """Original module semantics: flatten ALL dims of x, return shape (1,)."""
    x2d = x.reshape(1, INPUT_SIZE).astype(jnp.float32)
    return _mlp_pallas(x2d, params, block_m=1).reshape(OUTPUT_SIZE)


def init_params(key):
    """PyTorch Linear-style U(-1/sqrt(fan_in), +) init, stored in bf16."""
    ks = jax.random.split(key, 6)

    def uniform(k, shape, fan_in):
        bound = 1.0 / jnp.sqrt(jnp.float32(fan_in))
        return jax.random.uniform(k, shape, jnp.float32, -bound, bound)

    # w1/w2 stored as (fan_in, fan_out) == PyTorch weight.T;
    # w3 stored as a (1, HIDDEN) row (== PyTorch (out, in) weight for out=1).
    w1 = uniform(ks[0], (INPUT_SIZE, HIDDEN_SIZE), INPUT_SIZE)
    b1 = uniform(ks[1], (1, HIDDEN_SIZE), INPUT_SIZE)
    w2 = uniform(ks[2], (HIDDEN_SIZE, HIDDEN_SIZE), HIDDEN_SIZE)
    b2 = uniform(ks[3], (1, HIDDEN_SIZE), HIDDEN_SIZE)
    w3 = uniform(ks[4], (1, HIDDEN_SIZE), HIDDEN_SIZE)
    b3 = uniform(ks[5], (1, 1), HIDDEN_SIZE)
    cast = lambda a: a.astype(jnp.bfloat16)
    return tuple(cast(a) for a in (w1, b1, w2, b2, w3, b3))


def mlp_reference(xb, params):
    """Pure-JAX reference mimicking the kernel numerics (bf16 MXU, f32 acc)."""
    w1, b1, w2, b2, w3, b3 = params
    x = xb.reshape(-1, INPUT_SIZE).astype(jnp.float32).astype(jnp.bfloat16)
    h1 = jnp.maximum(
        jnp.dot(x, w1, preferred_element_type=jnp.float32)
        + b1.astype(jnp.float32), 0.0)
    h2 = jnp.maximum(
        jnp.dot(h1.astype(jnp.bfloat16), w2, preferred_element_type=jnp.float32)
        + b2.astype(jnp.float32), 0.0)
    return (jnp.sum(h2 * w3.astype(jnp.float32), axis=-1, keepdims=True)
            + b3.astype(jnp.float32))


if __name__ == "__main__":
    key = jax.random.PRNGKey(0)
    k_x, k_p = jax.random.split(key)
    params = init_params(k_p)

    # Small batched example: weights stay VMEM-resident across the batch grid.
    B = 16
    xb = jax.random.normal(k_x, (B, 28, 28), dtype=jnp.float32)
    out_b = jax.block_until_ready(mlp_forward_batched(xb, params))
    ref_b = mlp_reference(xb, params)
    assert out_b.shape == (B, OUTPUT_SIZE)
    assert jnp.allclose(out_b, ref_b, atol=1e-2, rtol=1e-2), (out_b[:4], ref_b[:4])

    # Original single-sample semantics (torch.flatten of the whole input).
    x1 = xb[0]                                   # (28, 28) -> flattens to 784
    out_1 = jax.block_until_ready(mlp_forward(x1, params))
    assert out_1.shape == (OUTPUT_SIZE,)
    assert jnp.allclose(out_1, ref_b[0], atol=1e-2, rtol=1e-2), (out_1, ref_b[0])

    print("KERNEL_OK")
</pallas_src>

<mosaic_0001>
module attributes {stable_mosaic.version = 11 : i64} {
  func.func @mlp_kernel(%arg0: i32, %arg1: memref<16x784xf32, #tpu.memory_space<vmem>>, %arg2: memref<784x392xbf16, #tpu.memory_space<vmem>>, %arg3: memref<1x392xbf16, #tpu.memory_space<vmem>>, %arg4: memref<392x392xbf16, #tpu.memory_space<vmem>>, %arg5: memref<1x392xbf16, #tpu.memory_space<vmem>>, %arg6: memref<1x392xbf16, #tpu.memory_space<vmem>>, %arg7: memref<1x1xbf16, #tpu.memory_space<vmem>>, %arg8: memref<16x1xf32, #tpu.memory_space<vmem>>) attributes {dimension_semantics = [#tpu.dimension_semantics<parallel>], iteration_bounds = array<i64: 1>, scalar_prefetch = 0 : i64, scratch_operands = 0 : i64, tpu.core_type = #tpu.core_type<tc>, window_params = [{transform_indices = @transform_0, window_bounds = array<i64: 16, 784>}, {pipeline_mode = #tpu.pipeline_mode<synchronous>, transform_indices = @transform_1, window_bounds = array<i64: 784, 392>}, {pipeline_mode = #tpu.pipeline_mode<synchronous>, transform_indices = @transform_2, window_bounds = array<i64: 1, 392>}, {pipeline_mode = #tpu.pipeline_mode<synchronous>, transform_indices = @transform_3, window_bounds = array<i64: 392, 392>}, {pipeline_mode = #tpu.pipeline_mode<synchronous>, transform_indices = @transform_4, window_bounds = array<i64: 1, 392>}, {pipeline_mode = #tpu.pipeline_mode<synchronous>, transform_indices = @transform_5, window_bounds = array<i64: 1, 392>}, {pipeline_mode = #tpu.pipeline_mode<synchronous>, transform_indices = @transform_6, window_bounds = array<i64: 1, 1>}, {transform_indices = @transform_7, window_bounds = array<i64: 16, 1>}]} {
    %c0 = arith.constant 0 : index
    %c0_0 = arith.constant 0 : index
    %0 = vector.load %arg1[%c0, %c0_0] : memref<16x784xf32, #tpu.memory_space<vmem>>, vector<16x784xf32>
    %1 = arith.truncf %0 : vector<16x784xf32> to vector<16x784xbf16>
    %c0_1 = arith.constant 0 : index
    %c0_2 = arith.constant 0 : index
    %2 = vector.load %arg2[%c0_1, %c0_2] : memref<784x392xbf16, #tpu.memory_space<vmem>>, vector<784x392xbf16>
    %cst = arith.constant dense<0.000000e+00> : vector<16x392xf32>
    %3 = tpu.matmul %1, %2, %cst {dimension_numbers = #tpu.dot_dimension_numbers<[1], [0], [0], [1], [0, 0, 1, 1], [], []>} : vector<16x784xbf16>, vector<784x392xbf16>, vector<16x392xf32> -> vector<16x392xf32>
    %c0_3 = arith.constant 0 : index
    %c0_4 = arith.constant 0 : index
    %4 = vector.load %arg3[%c0_3, %c0_4] : memref<1x392xbf16, #tpu.memory_space<vmem>>, vector<1x392xbf16>
    %5 = arith.extf %4 : vector<1x392xbf16> to vector<1x392xf32>
    %6 = vector.broadcast %5 : vector<1x392xf32> to vector<16x392xf32>
    %7 = arith.addf %3, %6 : vector<16x392xf32>
    %cst_5 = arith.constant 0.000000e+00 : f32
    %8 = vector.broadcast %cst_5 : f32 to vector<16x392xf32>
    %9 = arith.maximumf %7, %8 : vector<16x392xf32>
    %10 = arith.truncf %9 : vector<16x392xf32> to vector<16x392xbf16>
    %c0_6 = arith.constant 0 : index
    %c0_7 = arith.constant 0 : index
    %11 = vector.load %arg4[%c0_6, %c0_7] : memref<392x392xbf16, #tpu.memory_space<vmem>>, vector<392x392xbf16>
    %cst_8 = arith.constant dense<0.000000e+00> : vector<16x392xf32>
    %12 = tpu.matmul %10, %11, %cst_8 {dimension_numbers = #tpu.dot_dimension_numbers<[1], [0], [0], [1], [0, 0, 1, 1], [], []>} : vector<16x392xbf16>, vector<392x392xbf16>, vector<16x392xf32> -> vector<16x392xf32>
    %c0_9 = arith.constant 0 : index
    %c0_10 = arith.constant 0 : index
    %13 = vector.load %arg5[%c0_9, %c0_10] : memref<1x392xbf16, #tpu.memory_space<vmem>>, vector<1x392xbf16>
    %14 = arith.extf %13 : vector<1x392xbf16> to vector<1x392xf32>
    %15 = vector.broadcast %14 : vector<1x392xf32> to vector<16x392xf32>
    %16 = arith.addf %12, %15 : vector<16x392xf32>
    %cst_11 = arith.constant 0.000000e+00 : f32
    %17 = vector.broadcast %cst_11 : f32 to vector<16x392xf32>
    %18 = arith.maximumf %16, %17 : vector<16x392xf32>
    %c0_12 = arith.constant 0 : index
    %c0_13 = arith.constant 0 : index
    %19 = vector.load %arg6[%c0_12, %c0_13] : memref<1x392xbf16, #tpu.memory_space<vmem>>, vector<1x392xbf16>
    %20 = arith.extf %19 : vector<1x392xbf16> to vector<1x392xf32>
    %21 = vector.broadcast %20 : vector<1x392xf32> to vector<16x392xf32>
    %22 = arith.mulf %18, %21 : vector<16x392xf32>
    %cst_14 = arith.constant dense<0.000000e+00> : vector<16xf32>
    %23 = vector.multi_reduction <add>, %22, %cst_14 [1] : vector<16x392xf32> to vector<16xf32>
    %24 = vector.shape_cast %23 : vector<16xf32> to vector<16x1xf32>
    %c0_15 = arith.constant 0 : index
    %c0_16 = arith.constant 0 : index
    %25 = vector.load %arg7[%c0_15, %c0_16] : memref<1x1xbf16, #tpu.memory_space<vmem>>, vector<1x1xbf16>
    %26 = arith.extf %25 : vector<1x1xbf16> to vector<1x1xf32>
    %27 = vector.broadcast %26 : vector<1x1xf32> to vector<16x1xf32>
    %28 = arith.addf %24, %27 : vector<16x1xf32>
    %c0_17 = arith.constant 0 : index
    %c0_18 = arith.constant 0 : index
    %29 = vector.load %arg8[%c0_17, %c0_18] : memref<16x1xf32, #tpu.memory_space<vmem>>, vector<16x1xf32>
    tpu.vector_store %arg8[%c0_17, %c0_18], %28 {strides = array<i32>} : memref<16x1xf32, #tpu.memory_space<vmem>>, vector<16x1xf32>,
    return
  }
  func.func @transform_0(%arg0: i32) -> (i32, i32) {
    %c0_i32 = arith.constant 0 : i32
    %c0_i32_0 = arith.constant 0 : i32
    return %arg0, %c0_i32 : i32, i32
  }
  func.func @transform_1(%arg0: i32) -> (i32, i32) {
    %c0_i32 = arith.constant 0 : i32
    %c0_i32_0 = arith.constant 0 : i32
    %c0_i32_1 = arith.constant 0 : i32
    return %c0_i32, %c0_i32_0 : i32, i32
  }
  func.func @transform_2(%arg0: i32) -> (i32, i32) {
    %c0_i32 = arith.constant 0 : i32
    %c0_i32_0 = arith.constant 0 : i32
    %c0_i32_1 = arith.constant 0 : i32
    return %c0_i32, %c0_i32_0 : i32, i32
  }
  func.func @transform_3(%arg0: i32) -> (i32, i32) {
    %c0_i32 = arith.constant 0 : i32
    %c0_i32_0 = arith.constant 0 : i32
    %c0_i32_1 = arith.constant 0 : i32
    return %c0_i32, %c0_i32_0 : i32, i32
  }
  func.func @transform_4(%arg0: i32) -> (i32, i32) {
    %c0_i32 = arith.constant 0 : i32
    %c0_i32_0 = arith.constant 0 : i32
    %c0_i32_1 = arith.constant 0 : i32
    return %c0_i32, %c0_i32_0 : i32, i32
  }
  func.func @transform_5(%arg0: i32) -> (i32, i32) {
    %c0_i32 = arith.constant 0 : i32
    %c0_i32_0 = arith.constant 0 : i32
    %c0_i32_1 = arith.constant 0 : i32
    return %c0_i32, %c0_i32_0 : i32, i32
  }
  func.func @transform_6(%arg0: i32) -> (i32, i32) {
    %c0_i32 = arith.constant 0 : i32
    %c0_i32_0 = arith.constant 0 : i32
    %c0_i32_1 = arith.constant 0 : i32
    return %c0_i32, %c0_i32_0 : i32, i32
  }
  func.func @transform_7(%arg0: i32) -> (i32, i32) {
    %c0_i32 = arith.constant 0 : i32
    %c0_i32_0 = arith.constant 0 : i32
    return %arg0, %c0_i32 : i32, i32
  }
}

</mosaic_0001>

<llo_original>
// kernel: tpu_custom_call.1
$region0: #{tpu_custom_call.1}
  #allocation0 [shape = 'u32[]', space=smem, size = 0x4, offset = 0x4, fixed_abs, tag = 'smem constant byte address 0x4 - core index']
  #allocation1 [shape = 'u32[144,128]{1,0:T(1,128)}', space=vmem, size = 0x12000, scoped, tag = 'internal scratch']
  #allocation2 [shape = 'bf16[1,1]{1,0:T(2,128)S(1)}', space=vmem, size = 0x200, scoped, tag = 'scoped memory for tpu_custom_call.1']
  %s0 = inlined_call_operand.vmem [shape: f32[16,784], index: 0, kind: input, shape index: {}]
  %s1 = inlined_call_operand.vmem [shape: bf16[784,392], index: 1, kind: input, shape index: {}]
  %s2 = inlined_call_operand.vmem [shape: bf16[1,392], index: 2, kind: input, shape index: {}]
  %s3 = inlined_call_operand.vmem [shape: bf16[392,392], index: 3, kind: input, shape index: {}]
  %s4 = inlined_call_operand.vmem [shape: bf16[1,392], index: 4, kind: input, shape index: {}]
  %s5 = inlined_call_operand.vmem [shape: bf16[1,392], index: 5, kind: input, shape index: {}]
  %s6 = inlined_call_operand.<no memory space> [shape: bf16[1,1], index: 6, kind: input, shape index: {}]
  %s7 = inlined_call_operand.vmem [shape: f32[16,1], index: 7, kind: output, shape index: {}]
  %s8 = sld [smem:[#allocation0]]
  $region38: #{tpu_custom_call.1} parent=0
    _
  %s10 = ssub.s32 1, %s8
  %s11 = scalar_select 0, %s10, %s8
  %v12 = vstv %s6
  %13 = vst [vmem:[#allocation2] sm:$0x1] %v12
  // Predicated region
  $region2: #{tpu_custom_call.1} parent=0 // pred_check
    _
  $region3: #{tpu_custom_call.1} parent=0 // pred_check_branch
    %15 = sbr.rel (0) target = $region5
  $region4: #{tpu_custom_call.1} parent=0 // pred_region
    _
  $region5: #{tpu_custom_call.1} parent=0 // pred_fallthru
    _
  // Predicated region
  $region6: #{tpu_custom_call.1} parent=0 // pred_check
    _
  $region7: #{tpu_custom_call.1} parent=0 // pred_check_branch
    %17 = sbr.rel (0) target = $region9
  $region8: #{tpu_custom_call.1} parent=0 // pred_region
    _
  $region9: #{tpu_custom_call.1} parent=0 // pred_fallthru
    _
  // Predicated region
  $region10: #{tpu_custom_call.1} parent=0 // pred_check
    _
  $region11: #{tpu_custom_call.1} parent=0 // pred_check_branch
    %19 = sbr.rel (0) target = $region13
  $region12: #{tpu_custom_call.1} parent=0 // pred_region
    _
  $region13: #{tpu_custom_call.1} parent=0 // pred_fallthru
    _
  // Predicated region
  $region14: #{tpu_custom_call.1} parent=0 // pred_check
    _
  $region15: #{tpu_custom_call.1} parent=0 // pred_check_branch
    %21 = sbr.rel (0) target = $region17
  $region16: #{tpu_custom_call.1} parent=0 // pred_region
    _
  $region17: #{tpu_custom_call.1} parent=0 // pred_fallthru
    _
  // Predicated region
  $region18: #{tpu_custom_call.1} parent=0 // pred_check
    _
  $region19: #{tpu_custom_call.1} parent=0 // pred_check_branch
    %23 = sbr.rel (0) target = $region21
  $region20: #{tpu_custom_call.1} parent=0 // pred_region
    _
  $region21: #{tpu_custom_call.1} parent=0 // pred_fallthru
    _
  // Predicated region
  $region22: #{tpu_custom_call.1} parent=0 // pred_check
    _
  $region23: #{tpu_custom_call.1} parent=0 // pred_check_branch
    %25 = sbr.rel (0) target = $region25
  $region24: #{tpu_custom_call.1} parent=0 // pred_region
    _
  $region25: #{tpu_custom_call.1} parent=0 // pred_fallthru
    _
  // Predicated region
  $region26: #{tpu_custom_call.1} parent=0 // pred_check
    _
  $region27: #{tpu_custom_call.1} parent=0 // pred_check_branch
    %27 = sbr.rel (0) target = $region29
  $region28: #{tpu_custom_call.1} parent=0 // pred_region
    _
  $region29: #{tpu_custom_call.1} parent=0 // pred_fallthru
    _
  %v29 = vld [vmem:[%s0] sm:$0xff]
  %v30 = vld [vmem:[%s0 + $0x8] sm:$0xff]
  %v31 = vld [vmem:[%s0 + $0x10] sm:$0xff]
  %v32 = vld [vmem:[%s0 + $0x18] sm:$0xff]
  %v33 = vld [vmem:[%s0 + $0x20] sm:$0xff]
  %v34 = vld [vmem:[%s0 + $0x28] sm:$0xff]
  %v35 = vld [vmem:[%s0 + $0x30] sm:$0xff]
  %v36 = vld [vmem:[%s0 + $0x38] sm:$0xff]
  %v37 = vld [vmem:[%s0 + $0x40] sm:$0xff]
  %v38 = vld [vmem:[%s0 + $0x48] sm:$0xff]
  %v39 = vld [vmem:[%s0 + $0x50] sm:$0xff]
  %v40 = vld [vmem:[%s0 + $0x58] sm:$0xff]
  %v41 = vld [vmem:[%s0 + $0x60] sm:$0xff]
  %v42 = vld [vmem:[%s0 + $0x68] sm:$0xff]
  %v43 = vpack.c.bf16 %v36, %v29
  %v44 = vpack.c.bf16 %v37, %v30
  %v45 = vpack.c.bf16 %v38, %v31
  %v46 = vpack.c.bf16 %v39, %v32
  %v47 = vpack.c.bf16 %v40, %v33
  %v48 = vpack.c.bf16 %v41, %v34
  %v49 = vpack.c.bf16 %v42, %v35
  %v50 = vld [vmem:[%s1] sm:$0xff]
  %v51 = vld [vmem:[%s1 + $0x8] sm:$0xff]
  %v52 = vld [vmem:[%s1 + $0x10] sm:$0xff]
  %v53 = vld [vmem:[%s1 + $0x18] sm:$0xff]
  %v54 = vld [vmem:[%s1 + $0x20] sm:$0xff]
  %v55 = vld [vmem:[%s1 + $0x28] sm:$0xff]
  %v56 = vld [vmem:[%s1 + $0x30] sm:$0xff]
  %v57 = vld [vmem:[%s1 + $0x38] sm:$0xff]
  %v58 = vld [vmem:[%s1 + $0x40] sm:$0xff]
  %v59 = vld [vmem:[%s1 + $0x48] sm:$0xff]
  %v60 = vld [vmem:[%s1 + $0x50] sm:$0xff]
  %v61 = vld [vmem:[%s1 + $0x58] sm:$0xff]
  %v62 = vld [vmem:[%s1 + $0x60] sm:$0xff]
  %v63 = vld [vmem:[%s1 + $0x68] sm:$0xff]
  %v64 = vld [vmem:[%s1 + $0x70] sm:$0xff]
  %v65 = vld [vmem:[%s1 + $0x78] sm:$0xff]
  %v66 = vld [vmem:[%s1 + $0x80] sm:$0xff]
  %v67 = vld [vmem:[%s1 + $0x88] sm:$0xff]
  %v68 = vld [vmem:[%s1 + $0x90] sm:$0xff]
  %v69 = vld [vmem:[%s1 + $0x98] sm:$0xff]
  %v70 = vld [vmem:[%s1 + $0xa0] sm:$0xff]
  %v71 = vld [vmem:[%s1 + $0xa8] sm:$0xff]
  %v72 = vld [vmem:[%s1 + $0xb0] sm:$0xff]
  %v73 = vld [vmem:[%s1 + $0xb8] sm:$0xff]
  %v74 = vld [vmem:[%s1 + $0xc0] sm:$0xff]
  %v75 = vld [vmem:[%s1 + $0xc8] sm:$0xff]
  %v76 = vld [vmem:[%s1 + $0xd0] sm:$0xff]
  %v77 = vld [vmem:[%s1 + $0xd8] sm:$0xff]
  %v78 = vld [vmem:[%s1 + $0xe0] sm:$0xff]
  %v79 = vld [vmem:[%s1 + $0xe8] sm:$0xff]
  %v80 = vld [vmem:[%s1 + $0xf0] sm:$0xff]
  %v81 = vld [vmem:[%s1 + $0xf8] sm:$0xff]
  %v82 = vld [vmem:[%s1 + $0x100] sm:$0xff]
  %v83 = vld [vmem:[%s1 + $0x108] sm:$0xff]
  %v84 = vld [vmem:[%s1 + $0x110] sm:$0xff]
  %v85 = vld [vmem:[%s1 + $0x118] sm:$0xff]
  %v86 = vld [vmem:[%s1 + $0x120] sm:$0xff]
  %v87 = vld [vmem:[%s1 + $0x128] sm:$0xff]
  %v88 = vld [vmem:[%s1 + $0x130] sm:$0xff]
  %v89 = vld [vmem:[%s1 + $0x138] sm:$0xff]
  %v90 = vld [vmem:[%s1 + $0x140] sm:$0xff]
  %v91 = vld [vmem:[%s1 + $0x148] sm:$0xff]
  %v92 = vld [vmem:[%s1 + $0x150] sm:$0xff]
  %v93 = vld [vmem:[%s1 + $0x158] sm:$0xff]
  %v94 = vld [vmem:[%s1 + $0x160] sm:$0xff]
  %v95 = vld [vmem:[%s1 + $0x168] sm:$0xff]
  %v96 = vld [vmem:[%s1 + $0x170] sm:$0xff]
  %v97 = vld [vmem:[%s1 + $0x178] sm:$0xff]
  %v98 = vld [vmem:[%s1 + $0x180] sm:$0xff]
  %v99 = vld [vmem:[%s1 + $0x188] sm:$0xff]
  %v100 = vld [vmem:[%s1 + $0x190] sm:$0xff]
  %v101 = vld [vmem:[%s1 + $0x198] sm:$0xff]
  %v102 = vld [vmem:[%s1 + $0x1a0] sm:$0xff]
  %v103 = vld [vmem:[%s1 + $0x1a8] sm:$0xff]
  %v104 = vld [vmem:[%s1 + $0x1b0] sm:$0xff]
  %v105 = vld [vmem:[%s1 + $0x1b8] sm:$0xff]
  %v106 = vld [vmem:[%s1 + $0x1c0] sm:$0xff]
  %v107 = vld [vmem:[%s1 + $0x1c8] sm:$0xff]
  %v108 = vld [vmem:[%s1 + $0x1d0] sm:$0xff]
  %v109 = vld [vmem:[%s1 + $0x1d8] sm:$0xff]
  %v110 = vld [vmem:[%s1 + $0x1e0] sm:$0xff]
  %v111 = vld [vmem:[%s1 + $0x1e8] sm:$0xff]
  %v112 = vld [vmem:[%s1 + $0x1f0] sm:$0xff]
  %v113 = vld [vmem:[%s1 + $0x1f8] sm:$0xff]
  %v114 = vld [vmem:[%s1 + $0x200] sm:$0xff]
  %v115 = vld [vmem:[%s1 + $0x208] sm:$0xff]
  %v116 = vld [vmem:[%s1 + $0x210] sm:$0xff]
  %v117 = vld [vmem:[%s1 + $0x218] sm:$0xff]
  %v118 = vld [vmem:[%s1 + $0x220] sm:$0xff]
  %v119 = vld [vmem:[%s1 + $0x228] sm:$0xff]
  %v120 = vld [vmem:[%s1 + $0x230] sm:$0xff]
  %v121 = vld [vmem:[%s1 + $0x238] sm:$0xff]
  %v122 = vld [vmem:[%s1 + $0x240] sm:$0xff]
  %v123 = vld [vmem:[%s1 + $0x248] sm:$0xff]
  %v124 = vld [vmem:[%s1 + $0x250] sm:$0xff]
  %v125 = vld [vmem:[%s1 + $0x258] sm:$0xff]
  %v126 = vld [vmem:[%s1 + $0x260] sm:$0xff]
  %v127 = vld [vmem:[%s1 + $0x268] sm:$0xff]
  %v128 = vld [vmem:[%s1 + $0x270] sm:$0xff]
  %v129 = vld [vmem:[%s1 + $0x278] sm:$0xff]
  %v130 = vld [vmem:[%s1 + $0x280] sm:$0xff]
  %v131 = vld [vmem:[%s1 + $0x288] sm:$0xff]
  %v132 = vld [vmem:[%s1 + $0x290] sm:$0xff]
  %v133 = vld [vmem:[%s1 + $0x298] sm:$0xff]
  %v134 = vld [vmem:[%s1 + $0x2a0] sm:$0xff]
  %v135 = vld [vmem:[%s1 + $0x2a8] sm:$0xff]
  %v136 = vld [vmem:[%s1 + $0x2b0] sm:$0xff]
  %v137 = vld [vmem:[%s1 + $0x2b8] sm:$0xff]
  %v138 = vld [vmem:[%s1 + $0x2c0] sm:$0xff]
  %v139 = vld [vmem:[%s1 + $0x2c8] sm:$0xff]
  %v140 = vld [vmem:[%s1 + $0x2d0] sm:$0xff]
  %v141 = vld [vmem:[%s1 + $0x2d8] sm:$0xff]
  %v142 = vld [vmem:[%s1 + $0x2e0] sm:$0xff]
  %v143 = vld [vmem:[%s1 + $0x2e8] sm:$0xff]
  %v144 = vld [vmem:[%s1 + $0x2f0] sm:$0xff]
  %v145 = vld [vmem:[%s1 + $0x2f8] sm:$0xff]
  %v146 = vld [vmem:[%s1 + $0x300] sm:$0xff]
  %v147 = vld [vmem:[%s1 + $0x308] sm:$0xff]
  %v148 = vld [vmem:[%s1 + $0x310] sm:$0xff]
  %v149 = vld [vmem:[%s1 + $0x318] sm:$0xff]
  %v150 = vld [vmem:[%s1 + $0x320] sm:$0xff]
  %v151 = vld [vmem:[%s1 + $0x328] sm:$0xff]
  %v152 = vld [vmem:[%s1 + $0x330] sm:$0xff]
  %v153 = vld [vmem:[%s1 + $0x338] sm:$0xff]
  %v154 = vld [vmem:[%s1 + $0x340] sm:$0xff]
  %v155 = vld [vmem:[%s1 + $0x348] sm:$0xff]
  %v156 = vld [vmem:[%s1 + $0x350] sm:$0xff]
  %v157 = vld [vmem:[%s1 + $0x358] sm:$0xff]
  %v158 = vld [vmem:[%s1 + $0x360] sm:$0xff]
  %v159 = vld [vmem:[%s1 + $0x368] sm:$0xff]
  %v160 = vld [vmem:[%s1 + $0x370] sm:$0xff]
  %v161 = vld [vmem:[%s1 + $0x378] sm:$0xff]
  %v162 = vld [vmem:[%s1 + $0x380] sm:$0xff]
  %v163 = vld [vmem:[%s1 + $0x388] sm:$0xff]
  %v164 = vld [vmem:[%s1 + $0x390] sm:$0xff]
  %v165 = vld [vmem:[%s1 + $0x398] sm:$0xff]
  %v166 = vld [vmem:[%s1 + $0x3a0] sm:$0xff]
  %v167 = vld [vmem:[%s1 + $0x3a8] sm:$0xff]
  %v168 = vld [vmem:[%s1 + $0x3b0] sm:$0xff]
  %v169 = vld [vmem:[%s1 + $0x3b8] sm:$0xff]
  %v170 = vld [vmem:[%s1 + $0x3c0] sm:$0xff]
  %v171 = vld [vmem:[%s1 + $0x3c8] sm:$0xff]
  %v172 = vld [vmem:[%s1 + $0x3d0] sm:$0xff]
  %v173 = vld [vmem:[%s1 + $0x3d8] sm:$0xff]
  %v174 = vld [vmem:[%s1 + $0x3e0] sm:$0xff]
  %v175 = vld [vmem:[%s1 + $0x3e8] sm:$0xff]
  %v176 = vld [vmem:[%s1 + $0x3f0] sm:$0xff]
  %v177 = vld [vmem:[%s1 + $0x3f8] sm:$0xff]
  %v178 = vld [vmem:[%s1 + $0x400] sm:$0xff]
  %v179 = vld [vmem:[%s1 + $0x408] sm:$0xff]
  %v180 = vld [vmem:[%s1 + $0x410] sm:$0xff]
  %v181 = vld [vmem:[%s1 + $0x418] sm:$0xff]
  %v182 = vld [vmem:[%s1 + $0x420] sm:$0xff]
  %v183 = vld [vmem:[%s1 + $0x428] sm:$0xff]
  %v184 = vld [vmem:[%s1 + $0x430] sm:$0xff]
  %v185 = vld [vmem:[%s1 + $0x438] sm:$0xff]
  %v186 = vld [vmem:[%s1 + $0x440] sm:$0xff]
  %v187 = vld [vmem:[%s1 + $0x448] sm:$0xff]
  %v188 = vld [vmem:[%s1 + $0x450] sm:$0xff]
  %v189 = vld [vmem:[%s1 + $0x458] sm:$0xff]
  %v190 = vld [vmem:[%s1 + $0x460] sm:$0xff]
  %v191 = vld [vmem:[%s1 + $0x468] sm:$0xff]
  %v192 = vld [vmem:[%s1 + $0x470] sm:$0xff]
  %v193 = vld [vmem:[%s1 + $0x478] sm:$0xff]
  %v194 = vld [vmem:[%s1 + $0x480] sm:$0xff]
  %v195 = vld [vmem:[%s1 + $0x488] sm:$0xff]
  %v196 = vld [vmem:[%s1 + $0x490] sm:$0xff]
  %v197 = vld [vmem:[%s1 + $0x498] sm:$0xff]
  %v198 = vld [vmem:[%s1 + $0x4a0] sm:$0xff]
  %v199 = vld [vmem:[%s1 + $0x4a8] sm:$0xff]
  %v200 = vld [vmem:[%s1 + $0x4b0] sm:$0xff]
  %v201 = vld [vmem:[%s1 + $0x4b8] sm:$0xff]
  %v202 = vld [vmem:[%s1 + $0x4c0] sm:$0xff]
  %v203 = vld [vmem:[%s1 + $0x4c8] sm:$0xff]
  %v204 = vld [vmem:[%s1 + $0x4d0] sm:$0xff]
  %v205 = vld [vmem:[%s1 + $0x4d8] sm:$0xff]
  %v206 = vld [vmem:[%s1 + $0x4e0] sm:$0xff]
  %v207 = vld [vmem:[%s1 + $0x4e8] sm:$0xff]
  %v208 = vld [vmem:[%s1 + $0x4f0] sm:$0xff]
  %v209 = vld [vmem:[%s1 + $0x4f8] sm:$0xff]
  %v210 = vld [vmem:[%s1 + $0x500] sm:$0xff]
  %v211 = vld [vmem:[%s1 + $0x508] sm:$0xff]
  %v212 = vld [vmem:[%s1 + $0x510] sm:$0xff]
  %v213 = vld [vmem:[%s1 + $0x518] sm:$0xff]
  %v214 = vld [vmem:[%s1 + $0x520] sm:$0xff]
  %v215 = vld [vmem:[%s1 + $0x528] sm:$0xff]
  %v216 = vld [vmem:[%s1 + $0x530] sm:$0xff]
  %v217 = vld [vmem:[%s1 + $0x538] sm:$0xff]
  %v218 = vld [vmem:[%s1 + $0x540] sm:$0xff]
  %v219 = vld [vmem:[%s1 + $0x548] sm:$0xff]
  %v220 = vld [vmem:[%s1 + $0x550] sm:$0xff]
  %v221 = vld [vmem:[%s1 + $0x558] sm:$0xff]
  %v222 = vld [vmem:[%s1 + $0x560] sm:$0xff]
  %v223 = vld [vmem:[%s1 + $0x568] sm:$0xff]
  %v224 = vld [vmem:[%s1 + $0x570] sm:$0xff]
  %v225 = vld [vmem:[%s1 + $0x578] sm:$0xff]
  %v226 = vld [vmem:[%s1 + $0x580] sm:$0xff]
  %v227 = vld [vmem:[%s1 + $0x588] sm:$0xff]
  %v228 = vld [vmem:[%s1 + $0x590] sm:$0xff]
  %v229 = vld [vmem:[%s1 + $0x598] sm:$0xff]
  %v230 = vld [vmem:[%s1 + $0x5a0] sm:$0xff]
  %v231 = vld [vmem:[%s1 + $0x5a8] sm:$0xff]
  %v232 = vld [vmem:[%s1 + $0x5b0] sm:$0xff]
  %v233 = vld [vmem:[%s1 + $0x5b8] sm:$0xff]
  %v234 = vld [vmem:[%s1 + $0x5c0] sm:$0xff]
  %v235 = vld [vmem:[%s1 + $0x5c8] sm:$0xff]
  %v236 = vld [vmem:[%s1 + $0x5d0] sm:$0xff]
  %v237 = vld [vmem:[%s1 + $0x5d8] sm:$0xff]
  %v238 = vld [vmem:[%s1 + $0x5e0] sm:$0xff]
  %v239 = vld [vmem:[%s1 + $0x5e8] sm:$0xff]
  %v240 = vld [vmem:[%s1 + $0x5f0] sm:$0xff]
  %v241 = vld [vmem:[%s1 + $0x5f8] sm:$0xff]
  %v242 = vld [vmem:[%s1 + $0x600] sm:$0xff]
  %v243 = vld [vmem:[%s1 + $0x608] sm:$0xff]
  %v244 = vld [vmem:[%s1 + $0x610] sm:$0xff]
  %v245 = vld [vmem:[%s1 + $0x618] sm:$0xff]
  %v246 = vld [vmem:[%s2] sm:$0xf]
  %v247 = vunpack.c.l.bf16 %v246
  %v249 = vlaneseq
  %v250 = vshrl.u32 %v249, 7
  %v251 = vsub.s32 0, %v250
  %v252 = vrot.slane %v247, %v251
  %v253 = vlaneseq
  %v254 = vshrl.u32 %v253, 7
  %v255 = vsub.s32 2, %v254
  %v256 = vrot.slane %v247, %v255
  %v257 = vlaneseq
  %v258 = vshrl.u32 %v257, 7
  %v259 = vsub.s32 4, %v258
  %v260 = vrot.slane %v247, %v259
  %v261 = vlaneseq
  %v262 = vshrl.u32 %v261, 7
  %v263 = vsub.s32 6, %v262
  %v264 = vrot.slane %v247, %v263
  %v269 = vlaneseq
  %v270 = vshrl.u32 %v269, 7
  %v271 = vsub.s32 0, %v270
  %v272 = vrot.slane %v252, %v271
  %v273 = vlaneseq
  %v274 = vshrl.u32 %v273, 7
  %v275 = vsub.s32 0, %v274
  %v276 = vrot.slane %v256, %v275
  %v277 = vlaneseq
  %v278 = vshrl.u32 %v277, 7
  %v279 = vsub.s32 0, %v278
  %v280 = vrot.slane %v260, %v279
  %v281 = vlaneseq
  %v282 = vshrl.u32 %v281, 7
  %v283 = vsub.s32 0, %v282
  %v284 = vrot.slane %v264, %v283
  %v481 = vunpack.c.l.b16 %v50
  %v482 = vunpack.c.h.b16 %v50
  %v483 = vunpack.c.l.b16 %v51
  %v484 = vunpack.c.h.b16 %v51
  %v485 = vunpack.c.l.b16 %v52
  %v486 = vunpack.c.h.b16 %v52
  %v487 = vunpack.c.l.b16 %v53
  %v488 = vunpack.c.h.b16 %v53
  %v489 = vunpack.c.l.b16 %v54
  %v490 = vunpack.c.h.b16 %v54
  %v491 = vunpack.c.l.b16 %v55
  %v492 = vunpack.c.h.b16 %v55
  %v493 = vunpack.c.l.b16 %v56
  %v494 = vunpack.c.h.b16 %v56
  %v495 = vunpack.c.l.b16 %v57
  %v496 = vunpack.c.h.b16 %v57
  %v497 = vunpack.c.l.b16 %v58
  %v498 = vunpack.c.h.b16 %v58
  %v499 = vunpack.c.l.b16 %v59
  %v500 = vunpack.c.h.b16 %v59
  %v501 = vunpack.c.l.b16 %v60
  %v502 = vunpack.c.h.b16 %v60
  %v503 = vunpack.c.l.b16 %v61
  %v504 = vunpack.c.h.b16 %v61
  %v505 = vunpack.c.l.b16 %v62
  %v506 = vunpack.c.h.b16 %v62
  %v507 = vunpack.c.l.b16 %v63
  %v508 = vunpack.c.h.b16 %v63
  %v509 = vunpack.c.l.b16 %v64
  %v510 = vunpack.c.h.b16 %v64
  %v511 = vunpack.c.l.b16 %v65
  %v512 = vunpack.c.h.b16 %v65
  %v513 = vunpack.c.l.b16 %v66
  %v514 = vunpack.c.h.b16 %v66
  %v515 = vunpack.c.l.b16 %v67
  %v516 = vunpack.c.h.b16 %v67
  %v517 = vunpack.c.l.b16 %v68
  %v518 = vunpack.c.h.b16 %v68
  %v519 = vunpack.c.l.b16 %v69
  %v520 = vunpack.c.h.b16 %v69
  %v521 = vunpack.c.l.b16 %v70
  %v522 = vunpack.c.h.b16 %v70
  %v523 = vunpack.c.l.b16 %v71
  %v524 = vunpack.c.h.b16 %v71
  %v525 = vunpack.c.l.b16 %v72
  %v526 = vunpack.c.h.b16 %v72
  %v527 = vunpack.c.l.b16 %v73
  %v528 = vunpack.c.h.b16 %v73
  %v529 = vunpack.c.l.b16 %v74
  %v530 = vunpack.c.h.b16 %v74
  %v531 = vunpack.c.l.b16 %v75
  %v532 = vunpack.c.h.b16 %v75
  %v533 = vunpack.c.l.b16 %v76
  %v534 = vunpack.c.h.b16 %v76
  %v535 = vunpack.c.l.b16 %v77
  %v536 = vunpack.c.h.b16 %v77
  %v537 = vunpack.c.l.b16 %v78
  %v538 = vunpack.c.h.b16 %v78
  %v539 = vunpack.c.l.b16 %v79
  %v540 = vunpack.c.h.b16 %v79
  %v541 = vunpack.c.l.b16 %v80
  %v542 = vunpack.c.h.b16 %v80
  %v543 = vunpack.c.l.b16 %v81
  %v544 = vunpack.c.h.b16 %v81
  %v545 = vunpack.c.l.b16 %v82
  %v546 = vunpack.c.h.b16 %v82
  %v547 = vunpack.c.l.b16 %v83
  %v548 = vunpack.c.h.b16 %v83
  %v549 = vunpack.c.l.b16 %v84
  %v550 = vunpack.c.h.b16 %v84
  %v551 = vunpack.c.l.b16 %v85
  %v552 = vunpack.c.h.b16 %v85
  %v553 = vunpack.c.l.b16 %v86
  %v554 = vunpack.c.h.b16 %v86
  %v555 = vunpack.c.l.b16 %v87
  %v556 = vunpack.c.h.b16 %v87
  %v557 = vunpack.c.l.b16 %v88
  %v558 = vunpack.c.h.b16 %v88
  %v559 = vunpack.c.l.b16 %v89
  %v560 = vunpack.c.h.b16 %v89
  %v561 = vunpack.c.l.b16 %v90
  %v562 = vunpack.c.h.b16 %v90
  %v563 = vunpack.c.l.b16 %v91
  %v564 = vunpack.c.h.b16 %v91
  %v565 = vunpack.c.l.b16 %v92
  %v566 = vunpack.c.h.b16 %v92
  %v567 = vunpack.c.l.b16 %v93
  %v568 = vunpack.c.h.b16 %v93
  %v569 = vunpack.c.l.b16 %v94
  %v570 = vunpack.c.h.b16 %v94
  %v571 = vunpack.c.l.b16 %v95
  %v572 = vunpack.c.h.b16 %v95
  %v573 = vunpack.c.l.b16 %v96
  %v574 = vunpack.c.h.b16 %v96
  %v575 = vunpack.c.l.b16 %v97
  %v576 = vunpack.c.h.b16 %v97
  %v577 = vunpack.c.l.b16 %v98
  %v578 = vunpack.c.h.b16 %v98
  %v579 = vunpack.c.l.b16 %v99
  %v580 = vunpack.c.h.b16 %v99
  %v581 = vunpack.c.l.b16 %v100
  %v582 = vunpack.c.h.b16 %v100
  %v583 = vunpack.c.l.b16 %v101
  %v584 = vunpack.c.h.b16 %v101
  %v585 = vunpack.c.l.b16 %v102
  %v586 = vunpack.c.h.b16 %v102
  %v587 = vunpack.c.l.b16 %v103
  %v588 = vunpack.c.h.b16 %v103
  %v589 = vunpack.c.l.b16 %v104
  %v590 = vunpack.c.h.b16 %v104
  %v591 = vunpack.c.l.b16 %v105
  %v592 = vunpack.c.h.b16 %v105
  %v593 = vunpack.c.l.b16 %v106
  %v594 = vunpack.c.h.b16 %v106
  %v595 = vunpack.c.l.b16 %v107
  %v596 = vunpack.c.h.b16 %v107
  %v597 = vunpack.c.l.b16 %v108
  %v598 = vunpack.c.h.b16 %v108
  %v599 = vunpack.c.l.b16 %v109
  %v600 = vunpack.c.h.b16 %v109
  %v601 = vunpack.c.l.b16 %v110
  %v602 = vunpack.c.h.b16 %v110
  %v603 = vunpack.c.l.b16 %v111
  %v604 = vunpack.c.h.b16 %v111
  %v605 = vunpack.c.l.b16 %v112
  %v606 = vunpack.c.h.b16 %v112
  %v607 = vunpack.c.l.b16 %v113
  %v608 = vunpack.c.h.b16 %v113
  %v609 = vunpack.c.l.b16 %v114
  %v610 = vunpack.c.h.b16 %v114
  %v611 = vunpack.c.l.b16 %v115
  %v612 = vunpack.c.h.b16 %v115
  %v613 = vunpack.c.l.b16 %v116
  %v614 = vunpack.c.h.b16 %v116
  %v615 = vunpack.c.l.b16 %v117
  %v616 = vunpack.c.h.b16 %v117
  %v617 = vunpack.c.l.b16 %v118
  %v618 = vunpack.c.h.b16 %v118
  %v619 = vunpack.c.l.b16 %v119
  %v620 = vunpack.c.h.b16 %v119
  %v621 = vunpack.c.l.b16 %v120
  %v622 = vunpack.c.h.b16 %v120
  %v623 = vunpack.c.l.b16 %v121
  %v624 = vunpack.c.h.b16 %v121
  %v625 = vunpack.c.l.b16 %v122
  %v626 = vunpack.c.h.b16 %v122
  %v627 = vunpack.c.l.b16 %v123
  %v628 = vunpack.c.h.b16 %v123
  %v629 = vunpack.c.l.b16 %v124
  %v630 = vunpack.c.h.b16 %v124
  %v631 = vunpack.c.l.b16 %v125
  %v632 = vunpack.c.h.b16 %v125
  %v633 = vunpack.c.l.b16 %v126
  %v634 = vunpack.c.h.b16 %v126
  %v635 = vunpack.c.l.b16 %v127
  %v636 = vunpack.c.h.b16 %v127
  %v637 = vunpack.c.l.b16 %v128
  %v638 = vunpack.c.h.b16 %v128
  %v639 = vunpack.c.l.b16 %v129
  %v640 = vunpack.c.h.b16 %v129
  %v641 = vunpack.c.l.b16 %v130
  %v642 = vunpack.c.h.b16 %v130
  %v643 = vunpack.c.l.b16 %v131
  %v644 = vunpack.c.h.b16 %v131
  %v645 = vunpack.c.l.b16 %v132
  %v646 = vunpack.c.h.b16 %v132
  %v647 = vunpack.c.l.b16 %v133
  %v648 = vunpack.c.h.b16 %v133
  %v649 = vunpack.c.l.b16 %v134
  %v650 = vunpack.c.h.b16 %v134
  %v651 = vunpack.c.l.b16 %v135
  %v652 = vunpack.c.h.b16 %v135
  %v653 = vunpack.c.l.b16 %v136
  %v654 = vunpack.c.h.b16 %v136
  %v655 = vunpack.c.l.b16 %v137
  %v656 = vunpack.c.h.b16 %v137
  %v657 = vunpack.c.l.b16 %v138
  %v658 = vunpack.c.h.b16 %v138
  %v659 = vunpack.c.l.b16 %v139
  %v660 = vunpack.c.h.b16 %v139
  %v661 = vunpack.c.l.b16 %v140
  %v662 = vunpack.c.h.b16 %v140
  %v663 = vunpack.c.l.b16 %v141
  %v664 = vunpack.c.h.b16 %v141
  %v665 = vunpack.c.l.b16 %v142
  %v666 = vunpack.c.h.b16 %v142
  %v667 = vunpack.c.l.b16 %v143
  %v668 = vunpack.c.h.b16 %v143
  %v669 = vunpack.c.l.b16 %v144
  %v670 = vunpack.c.h.b16 %v144
  %v671 = vunpack.c.l.b16 %v145
  %v672 = vunpack.c.h.b16 %v145
  %v673 = vunpack.c.l.b16 %v146
  %v674 = vunpack.c.h.b16 %v146
  %v675 = vunpack.c.l.b16 %v147
  %v676 = vunpack.c.h.b16 %v147
  %v677 = vunpack.c.l.b16 %v148
  %v678 = vunpack.c.h.b16 %v148
  %v679 = vunpack.c.l.b16 %v149
  %v680 = vunpack.c.h.b16 %v149
  %v681 = vunpack.c.l.b16 %v150
  %v682 = vunpack.c.h.b16 %v150
  %v683 = vunpack.c.l.b16 %v151
  %v684 = vunpack.c.h.b16 %v151
  %v685 = vunpack.c.l.b16 %v152
  %v686 = vunpack.c.h.b16 %v152
  %v687 = vunpack.c.l.b16 %v153
  %v688 = vunpack.c.h.b16 %v153
  %v689 = vunpack.c.l.b16 %v154
  %v690 = vunpack.c.h.b16 %v154
  %v691 = vunpack.c.l.b16 %v155
  %v692 = vunpack.c.h.b16 %v155
  %v693 = vunpack.c.l.b16 %v156
  %v694 = vunpack.c.h.b16 %v156
  %v695 = vunpack.c.l.b16 %v157
  %v696 = vunpack.c.h.b16 %v157
  %v697 = vunpack.c.l.b16 %v158
  %v698 = vunpack.c.h.b16 %v158
  %v699 = vunpack.c.l.b16 %v159
  %v700 = vunpack.c.h.b16 %v159
  %v701 = vunpack.c.l.b16 %v160
  %v702 = vunpack.c.h.b16 %v160
  %v703 = vunpack.c.l.b16 %v161
  %v704 = vunpack.c.h.b16 %v161
  %v705 = vunpack.c.l.b16 %v162
  %v706 = vunpack.c.h.b16 %v162
  %v707 = vunpack.c.l.b16 %v163
  %v708 = vunpack.c.h.b16 %v163
  %v709 = vunpack.c.l.b16 %v164
  %v710 = vunpack.c.h.b16 %v164
  %v711 = vunpack.c.l.b16 %v165
  %v712 = vunpack.c.h.b16 %v165
  %v713 = vunpack.c.l.b16 %v166
  %v714 = vunpack.c.h.b16 %v166
  %v715 = vunpack.c.l.b16 %v167
  %v716 = vunpack.c.h.b16 %v167
  %v717 = vunpack.c.l.b16 %v168
  %v718 = vunpack.c.h.b16 %v168
  %v719 = vunpack.c.l.b16 %v169
  %v720 = vunpack.c.h.b16 %v169
  %v721 = vunpack.c.l.b16 %v170
  %v722 = vunpack.c.h.b16 %v170
  %v723 = vunpack.c.l.b16 %v171
  %v724 = vunpack.c.h.b16 %v171
  %v725 = vunpack.c.l.b16 %v172
  %v726 = vunpack.c.h.b16 %v172
  %v727 = vunpack.c.l.b16 %v173
  %v728 = vunpack.c.h.b16 %v173
  %v729 = vunpack.c.l.b16 %v174
  %v730 = vunpack.c.h.b16 %v174
  %v731 = vunpack.c.l.b16 %v175
  %v732 = vunpack.c.h.b16 %v175
  %v733 = vunpack.c.l.b16 %v176
  %v734 = vunpack.c.h.b16 %v176
  %v735 = vunpack.c.l.b16 %v177
  %v736 = vunpack.c.h.b16 %v177
  %v737 = vunpack.c.l.b16 %v178
  %v738 = vunpack.c.h.b16 %v178
  %v739 = vunpack.c.l.b16 %v179
  %v740 = vunpack.c.h.b16 %v179
  %v741 = vunpack.c.l.b16 %v180
  %v742 = vunpack.c.h.b16 %v180
  %v743 = vunpack.c.l.b16 %v181
  %v744 = vunpack.c.h.b16 %v181
  %v745 = vunpack.c.l.b16 %v182
  %v746 = vunpack.c.h.b16 %v182
  %v747 = vunpack.c.l.b16 %v183
  %v748 = vunpack.c.h.b16 %v183
  %v749 = vunpack.c.l.b16 %v184
  %v750 = vunpack.c.h.b16 %v184
  %v751 = vunpack.c.l.b16 %v185
  %v752 = vunpack.c.h.b16 %v185
  %v753 = vunpack.c.l.b16 %v186
  %v754 = vunpack.c.h.b16 %v186
  %v755 = vunpack.c.l.b16 %v187
  %v756 = vunpack.c.h.b16 %v187
  %v757 = vunpack.c.l.b16 %v188
  %v758 = vunpack.c.h.b16 %v188
  %v759 = vunpack.c.l.b16 %v189
  %v760 = vunpack.c.h.b16 %v189
  %v761 = vunpack.c.l.b16 %v190
  %v762 = vunpack.c.h.b16 %v190
  %v763 = vunpack.c.l.b16 %v191
  %v764 = vunpack.c.h.b16 %v191
  %v765 = vunpack.c.l.b16 %v192
  %v766 = vunpack.c.h.b16 %v192
  %v767 = vunpack.c.l.b16 %v193
  %v768 = vunpack.c.h.b16 %v193
  %v769 = vunpack.c.l.b16 %v194
  %v770 = vunpack.c.h.b16 %v194
  %v771 = vunpack.c.l.b16 %v195
  %v772 = vunpack.c.h.b16 %v195
  %v773 = vunpack.c.l.b16 %v196
  %v774 = vunpack.c.h.b16 %v196
  %v775 = vunpack.c.l.b16 %v197
  %v776 = vunpack.c.h.b16 %v197
  %v777 = vunpack.c.l.b16 %v198
  %v778 = vunpack.c.h.b16 %v198
  %v779 = vunpack.c.l.b16 %v199
  %v780 = vunpack.c.h.b16 %v199
  %v781 = vunpack.c.l.b16 %v200
  %v782 = vunpack.c.h.b16 %v200
  %v783 = vunpack.c.l.b16 %v201
  %v784 = vunpack.c.h.b16 %v201
  %v785 = vunpack.c.l.b16 %v202
  %v786 = vunpack.c.h.b16 %v202
  %v787 = vunpack.c.l.b16 %v203
  %v788 = vunpack.c.h.b16 %v203
  %v789 = vunpack.c.l.b16 %v204
  %v790 = vunpack.c.h.b16 %v204
  %v791 = vunpack.c.l.b16 %v205
  %v792 = vunpack.c.h.b16 %v205
  %v793 = vunpack.c.l.b16 %v206
  %v794 = vunpack.c.h.b16 %v206
  %v795 = vunpack.c.l.b16 %v207
  %v796 = vunpack.c.h.b16 %v207
  %v797 = vunpack.c.l.b16 %v208
  %v798 = vunpack.c.h.b16 %v208
  %v799 = vunpack.c.l.b16 %v209
  %v800 = vunpack.c.h.b16 %v209
  %v801 = vunpack.c.l.b16 %v210
  %v802 = vunpack.c.h.b16 %v210
  %v803 = vunpack.c.l.b16 %v211
  %v804 = vunpack.c.h.b16 %v211
  %v805 = vunpack.c.l.b16 %v212
  %v806 = vunpack.c.h.b16 %v212
  %v807 = vunpack.c.l.b16 %v213
  %v808 = vunpack.c.h.b16 %v213
  %v809 = vunpack.c.l.b16 %v214
  %v810 = vunpack.c.h.b16 %v214
  %v811 = vunpack.c.l.b16 %v215
  %v812 = vunpack.c.h.b16 %v215
  %v813 = vunpack.c.l.b16 %v216
  %v814 = vunpack.c.h.b16 %v216
  %v815 = vunpack.c.l.b16 %v217
  %v816 = vunpack.c.h.b16 %v217
  %v817 = vunpack.c.l.b16 %v218
  %v818 = vunpack.c.h.b16 %v218
  %v819 = vunpack.c.l.b16 %v219
  %v820 = vunpack.c.h.b16 %v219
  %v821 = vunpack.c.l.b16 %v220
  %v822 = vunpack.c.h.b16 %v220
  %v823 = vunpack.c.l.b16 %v221
  %v824 = vunpack.c.h.b16 %v221
  %v825 = vunpack.c.l.b16 %v222
  %v826 = vunpack.c.h.b16 %v222
  %v827 = vunpack.c.l.b16 %v223
  %v828 = vunpack.c.h.b16 %v223
  %v829 = vunpack.c.l.b16 %v224
  %v830 = vunpack.c.h.b16 %v224
  %v831 = vunpack.c.l.b16 %v225
  %v832 = vunpack.c.h.b16 %v225
  %v833 = vunpack.c.l.b16 %v226
  %v834 = vunpack.c.h.b16 %v226
  %v835 = vunpack.c.l.b16 %v227
  %v836 = vunpack.c.h.b16 %v227
  %v837 = vunpack.c.l.b16 %v228
  %v838 = vunpack.c.h.b16 %v228
  %v839 = vunpack.c.l.b16 %v229
  %v840 = vunpack.c.h.b16 %v229
  %v841 = vunpack.c.l.b16 %v230
  %v842 = vunpack.c.h.b16 %v230
  %v843 = vunpack.c.l.b16 %v231
  %v844 = vunpack.c.h.b16 %v231
  %v845 = vunpack.c.l.b16 %v232
  %v846 = vunpack.c.h.b16 %v232
  %v847 = vunpack.c.l.b16 %v233
  %v848 = vunpack.c.h.b16 %v233
  %v849 = vunpack.c.l.b16 %v234
  %v850 = vunpack.c.h.b16 %v234
  %v851 = vunpack.c.l.b16 %v235
  %v852 = vunpack.c.h.b16 %v235
  %v853 = vunpack.c.l.b16 %v236
  %v854 = vunpack.c.h.b16 %v236
  %v855 = vunpack.c.l.b16 %v237
  %v856 = vunpack.c.h.b16 %v237
  %v857 = vunpack.c.l.b16 %v238
  %v858 = vunpack.c.h.b16 %v238
  %v859 = vunpack.c.l.b16 %v239
  %v860 = vunpack.c.h.b16 %v239
  %v861 = vunpack.c.l.b16 %v240
  %v862 = vunpack.c.h.b16 %v240
  %v863 = vunpack.c.l.b16 %v241
  %v864 = vunpack.c.h.b16 %v241
  %v865 = vunpack.c.l.b16 %v242
  %v866 = vunpack.c.h.b16 %v242
  %v867 = vunpack.c.l.b16 %v243
  %v868 = vunpack.c.h.b16 %v243
  %v869 = vunpack.c.l.b16 %v244
  %v870 = vunpack.c.h.b16 %v244
  %v871 = vunpack.c.l.b16 %v245
  %v872 = vunpack.c.h.b16 %v245
  %v873 = vpack.c.b16 %v485, %v481
  %v874 = vpack.c.b16 %v486, %v482
  %v875 = vpack.c.b16 %v487, %v483
  %v876 = vpack.c.b16 %v488, %v484
  %v877 = vpack.c.b16 %v493, %v489
  %v878 = vpack.c.b16 %v494, %v490
  %v879 = vpack.c.b16 %v495, %v491
  %v880 = vpack.c.b16 %v496, %v492
  %v881 = vpack.c.b16 %v501, %v497
  %v882 = vpack.c.b16 %v502, %v498
  %v883 = vpack.c.b16 %v503, %v499
  %v884 = vpack.c.b16 %v504, %v500
  %v885 = vpack.c.b16 %v509, %v505
  %v886 = vpack.c.b16 %v510, %v506
  %v887 = vpack.c.b16 %v511, %v507
  %v888 = vpack.c.b16 %v512, %v508
  %v889 = vpack.c.b16 %v517, %v513
  %v890 = vpack.c.b16 %v518, %v514
  %v891 = vpack.c.b16 %v519, %v515
  %v892 = vpack.c.b16 %v520, %v516
  %v893 = vpack.c.b16 %v525, %v521
  %v894 = vpack.c.b16 %v526, %v522
  %v895 = vpack.c.b16 %v527, %v523
  %v896 = vpack.c.b16 %v528, %v524
  %v897 = vpack.c.b16 %v533, %v529
  %v898 = vpack.c.b16 %v534, %v530
  %v899 = vpack.c.b16 %v535, %v531
  %v900 = vpack.c.b16 %v536, %v532
  %v901 = vpack.c.b16 %v541, %v537
  %v902 = vpack.c.b16 %v542, %v538
  %v903 = vpack.c.b16 %v543, %v539
  %v904 = vpack.c.b16 %v544, %v540
  %v905 = vpack.c.b16 %v549, %v545
  %v906 = vpack.c.b16 %v550, %v546
  %v907 = vpack.c.b16 %v551, %v547
  %v908 = vpack.c.b16 %v552, %v548
  %v909 = vpack.c.b16 %v557, %v553
  %v910 = vpack.c.b16 %v558, %v554
  %v911 = vpack.c.b16 %v559, %v555
  %v912 = vpack.c.b16 %v560, %v556
  %v913 = vpack.c.b16 %v565, %v561
  %v914 = vpack.c.b16 %v566, %v562
  %v915 = vpack.c.b16 %v567, %v563
  %v916 = vpack.c.b16 %v568, %v564
  %v917 = vpack.c.b16 %v573, %v569
  %v918 = vpack.c.b16 %v574, %v570
  %v919 = vpack.c.b16 %v575, %v571
  %v920 = vpack.c.b16 %v576, %v572
  %v921 = vpack.c.b16 %v581, %v577
  %v922 = vpack.c.b16 %v582, %v578
  %v923 = vpack.c.b16 %v583, %v579
  %v924 = vpack.c.b16 %v584, %v580
  %v925 = vpack.c.b16 %v589, %v585
  %v926 = vpack.c.b16 %v590, %v586
  %v927 = vpack.c.b16 %v591, %v587
  %v928 = vpack.c.b16 %v592, %v588
  %v929 = vpack.c.b16 %v597, %v593
  %v930 = vpack.c.b16 %v598, %v594
  %v931 = vpack.c.b16 %v599, %v595
  %v932 = vpack.c.b16 %v600, %v596
  %v933 = vpack.c.b16 %v605, %v601
  %v934 = vpack.c.b16 %v606, %v602
  %v935 = vpack.c.b16 %v607, %v603
  %v936 = vpack.c.b16 %v608, %v604
  %v937 = vpack.c.b16 %v613, %v609
  %v938 = vpack.c.b16 %v614, %v610
  %v939 = vpack.c.b16 %v615, %v611
  %v940 = vpack.c.b16 %v616, %v612
  %v941 = vpack.c.b16 %v621, %v617
  %v942 = vpack.c.b16 %v622, %v618
  %v943 = vpack.c.b16 %v623, %v619
  %v944 = vpack.c.b16 %v624, %v620
  %v945 = vpack.c.b16 %v629, %v625
  %v946 = vpack.c.b16 %v630, %v626
  %v947 = vpack.c.b16 %v631, %v627
  %v948 = vpack.c.b16 %v632, %v628
  %v949 = vpack.c.b16 %v637, %v633
  %v950 = vpack.c.b16 %v638, %v634
  %v951 = vpack.c.b16 %v639, %v635
  %v952 = vpack.c.b16 %v640, %v636
  %v953 = vpack.c.b16 %v645, %v641
  %v954 = vpack.c.b16 %v646, %v642
  %v955 = vpack.c.b16 %v647, %v643
  %v956 = vpack.c.b16 %v648, %v644
  %v957 = vpack.c.b16 %v653, %v649
  %v958 = vpack.c.b16 %v654, %v650
  %v959 = vpack.c.b16 %v655, %v651
  %v960 = vpack.c.b16 %v656, %v652
  %v961 = vpack.c.b16 %v661, %v657
  %v962 = vpack.c.b16 %v662, %v658
  %v963 = vpack.c.b16 %v663, %v659
  %v964 = vpack.c.b16 %v664, %v660
  %v965 = vpack.c.b16 %v669, %v665
  %v966 = vpack.c.b16 %v670, %v666
  %v967 = vpack.c.b16 %v671, %v667
  %v968 = vpack.c.b16 %v672, %v668
  %v969 = vpack.c.b16 %v677, %v673
  %v970 = vpack.c.b16 %v678, %v674
  %v971 = vpack.c.b16 %v679, %v675
  %v972 = vpack.c.b16 %v680, %v676
  %v973 = vpack.c.b16 %v685, %v681
  %v974 = vpack.c.b16 %v686, %v682
  %v975 = vpack.c.b16 %v687, %v683
  %v976 = vpack.c.b16 %v688, %v684
  %v977 = vpack.c.b16 %v693, %v689
  %v978 = vpack.c.b16 %v694, %v690
  %v979 = vpack.c.b16 %v695, %v691
  %v980 = vpack.c.b16 %v696, %v692
  %v981 = vpack.c.b16 %v701, %v697
  %v982 = vpack.c.b16 %v702, %v698
  %v983 = vpack.c.b16 %v703, %v699
  %v984 = vpack.c.b16 %v704, %v700
  %v985 = vpack.c.b16 %v709, %v705
  %v986 = vpack.c.b16 %v710, %v706
  %v987 = vpack.c.b16 %v711, %v707
  %v988 = vpack.c.b16 %v712, %v708
  %v989 = vpack.c.b16 %v717, %v713
  %v990 = vpack.c.b16 %v718, %v714
  %v991 = vpack.c.b16 %v719, %v715
  %v992 = vpack.c.b16 %v720, %v716
  %v993 = vpack.c.b16 %v725, %v721
  %v994 = vpack.c.b16 %v726, %v722
  %v995 = vpack.c.b16 %v727, %v723
  %v996 = vpack.c.b16 %v728, %v724
  %v997 = vpack.c.b16 %v733, %v729
  %v998 = vpack.c.b16 %v734, %v730
  %v999 = vpack.c.b16 %v735, %v731
  %v1000 = vpack.c.b16 %v736, %v732
  %v1001 = vpack.c.b16 %v741, %v737
  %v1002 = vpack.c.b16 %v742, %v738
  %v1003 = vpack.c.b16 %v743, %v739
  %v1004 = vpack.c.b16 %v744, %v740
  %v1005 = vpack.c.b16 %v749, %v745
  %v1006 = vpack.c.b16 %v750, %v746
  %v1007 = vpack.c.b16 %v751, %v747
  %v1008 = vpack.c.b16 %v752, %v748
  %v1009 = vpack.c.b16 %v757, %v753
  %v1010 = vpack.c.b16 %v758, %v754
  %v1011 = vpack.c.b16 %v759, %v755
  %v1012 = vpack.c.b16 %v760, %v756
  %v1013 = vpack.c.b16 %v765, %v761
  %v1014 = vpack.c.b16 %v766, %v762
  %v1015 = vpack.c.b16 %v767, %v763
  %v1016 = vpack.c.b16 %v768, %v764
  %v1017 = vpack.c.b16 %v773, %v769
  %v1018 = vpack.c.b16 %v774, %v770
  %v1019 = vpack.c.b16 %v775, %v771
  %v1020 = vpack.c.b16 %v776, %v772
  %v1021 = vpack.c.b16 %v781, %v777
  %v1022 = vpack.c.b16 %v782, %v778
  %v1023 = vpack.c.b16 %v783, %v779
  %v1024 = vpack.c.b16 %v784, %v780
  %v1025 = vpack.c.b16 %v789, %v785
  %v1026 = vpack.c.b16 %v790, %v786
  %v1027 = vpack.c.b16 %v791, %v787
  %v1028 = vpack.c.b16 %v792, %v788
  %v1029 = vpack.c.b16 %v797, %v793
  %v1030 = vpack.c.b16 %v798, %v794
  %v1031 = vpack.c.b16 %v799, %v795
  %v1032 = vpack.c.b16 %v800, %v796
  %v1033 = vpack.c.b16 %v805, %v801
  %v1034 = vpack.c.b16 %v806, %v802
  %v1035 = vpack.c.b16 %v807, %v803
  %v1036 = vpack.c.b16 %v808, %v804
  %v1037 = vpack.c.b16 %v813, %v809
  %v1038 = vpack.c.b16 %v814, %v810
  %v1039 = vpack.c.b16 %v815, %v811
  %v1040 = vpack.c.b16 %v816, %v812
  %v1041 = vpack.c.b16 %v821, %v817
  %v1042 = vpack.c.b16 %v822, %v818
  %v1043 = vpack.c.b16 %v823, %v819
  %v1044 = vpack.c.b16 %v824, %v820
  %v1045 = vpack.c.b16 %v829, %v825
  %v1046 = vpack.c.b16 %v830, %v826
  %v1047 = vpack.c.b16 %v831, %v827
  %v1048 = vpack.c.b16 %v832, %v828
  %v1049 = vpack.c.b16 %v837, %v833
  %v1050 = vpack.c.b16 %v838, %v834
  %v1051 = vpack.c.b16 %v839, %v835
  %v1052 = vpack.c.b16 %v840, %v836
  %v1053 = vpack.c.b16 %v845, %v841
  %v1054 = vpack.c.b16 %v846, %v842
  %v1055 = vpack.c.b16 %v847, %v843
  %v1056 = vpack.c.b16 %v848, %v844
  %v1057 = vpack.c.b16 %v853, %v849
  %v1058 = vpack.c.b16 %v854, %v850
  %v1059 = vpack.c.b16 %v855, %v851
  %v1060 = vpack.c.b16 %v856, %v852
  %v1061 = vpack.c.b16 %v861, %v857
  %v1062 = vpack.c.b16 %v862, %v858
  %v1063 = vpack.c.b16 %v863, %v859
  %v1064 = vpack.c.b16 %v864, %v860
  %v1065 = vpack.c.b16 %v869, %v865
  %v1066 = vpack.c.b16 %v870, %v866
  %v1067 = vpack.c.b16 %v871, %v867
  %v1068 = vpack.c.b16 %v872, %v868
  %vm1265 = vcmask 130048
  %v1267 = vsel %vm1265, %v49, 0
  %1269 = vmatprep.subr.bf16.mxu0 %v874
  %1270 = vmatpush1.bf16.msra.mxu0 %v873
  %1271 = vmatprep.subr.bf16.mxu0 %v878
  %1272 = vmatpush1.bf16.msra.mxu0 %v877
  %1273 = vmatprep.subr.bf16.mxu0 %v882
  %1274 = vmatpush1.bf16.msra.mxu0 %v881
  %1275 = vmatprep.subr.bf16.mxu0 %v886
  %1276 = vmatpush1.bf16.msra.mxu0 %v885
  %1277 = vmatprep.subr.bf16.mxu0 %v890
  %1278 = vmatpush1.bf16.msra.mxu0 %v889
  %1279 = vmatprep.subr.bf16.mxu0 %v894
  %1280 = vmatpush1.bf16.msra.mxu0 %v893
  %1281 = vmatprep.subr.bf16.mxu0 %v898
  %1282 = vmatpush1.bf16.msra.mxu0 %v897
  %1283 = vmatprep.subr.bf16.mxu0 %v902
  %1284 = vmatpush1.bf16.msra.mxu0 %v901
  %1285 = vmatprep.subr.bf16.mxu0 %v906
  %1286 = vmatpush1.bf16.msra.mxu0 %v905
  %1287 = vmatprep.subr.bf16.mxu0 %v910
  %1288 = vmatpush1.bf16.msra.mxu0 %v909
  %1289 = vmatprep.subr.bf16.mxu0 %v914
  %1290 = vmatpush1.bf16.msra.mxu0 %v913
  %1291 = vmatprep.subr.bf16.mxu0 %v918
  %1292 = vmatpush1.bf16.msra.mxu0 %v917
  %1293 = vmatprep.subr.bf16.mxu0 %v922
  %1294 = vmatpush1.bf16.msra.mxu0 %v921
  %1295 = vmatprep.subr.bf16.mxu0 %v926
  %1296 = vmatpush1.bf16.msra.mxu0 %v925
  %1297 = vmatprep.subr.bf16.mxu0 %v930
  %1298 = vmatpush1.bf16.msra.mxu0 %v929
  %1299 = vmatprep.subr.bf16.mxu0 %v934
  %1300 = vmatpush1.bf16.msra.mxu0 %v933
  %1301 = vmatprep.mubr.bf16.mxu0 %v44
  %1302 = vmatmul.mubr.bf16.gmra.mrb[0].mxu0 %v43
  %v1303 = vpop.f32.mrb[0].mxu0
  %v1304 = vadd.f32 %v272, %v1303
  %v1305 = vpop.f32.mrb[0].mxu0
  %v1306 = vadd.f32 %v276, %v1305
  %v1307 = vpop.f32.mrb[0].mxu0
  %v1308 = vadd.f32 %v272, %v1307
  %v1309 = vpop.f32.mrb[0].mxu0
  %v1310 = vadd.f32 %v276, %v1309
  %1311 = vdwg.mxu0
  %1312 = vmatprep.subr.bf16.mxu0 %v938
  %1313 = vmatpush1.bf16.msra.mxu0 %v937
  %1314 = vmatprep.subr.bf16.mxu0 %v942
  %1315 = vmatpush1.bf16.msra.mxu0 %v941
  %1316 = vmatprep.subr.bf16.mxu0 %v946
  %1317 = vmatpush1.bf16.msra.mxu0 %v945
  %1318 = vmatprep.subr.bf16.mxu0 %v950
  %1319 = vmatpush1.bf16.msra.mxu0 %v949
  %1320 = vmatprep.subr.bf16.mxu0 %v954
  %1321 = vmatpush1.bf16.msra.mxu0 %v953
  %1322 = vmatprep.subr.bf16.mxu0 %v958
  %1323 = vmatpush1.bf16.msra.mxu0 %v957
  %1324 = vmatprep.subr.bf16.mxu0 %v962
  %1325 = vmatpush1.bf16.msra.mxu0 %v961
  %1326 = vmatprep.subr.bf16.mxu0 %v966
  %1327 = vmatpush1.bf16.msra.mxu0 %v965
  %1328 = vmatprep.subr.bf16.mxu0 %v970
  %1329 = vmatpush1.bf16.msra.mxu0 %v969
  %1330 = vmatprep.subr.bf16.mxu0 %v974
  %1331 = vmatpush1.bf16.msra.mxu0 %v973
  %1332 = vmatprep.subr.bf16.mxu0 %v978
  %1333 = vmatpush1.bf16.msra.mxu0 %v977
  %1334 = vmatprep.subr.bf16.mxu0 %v982
  %1335 = vmatpush1.bf16.msra.mxu0 %v981
  %1336 = vmatprep.subr.bf16.mxu0 %v986
  %1337 = vmatpush1.bf16.msra.mxu0 %v985
  %1338 = vmatprep.subr.bf16.mxu0 %v990
  %1339 = vmatpush1.bf16.msra.mxu0 %v989
  %1340 = vmatprep.subr.bf16.mxu0 %v994
  %1341 = vmatpush1.bf16.msra.mxu0 %v993
  %1342 = vmatprep.subr.bf16.mxu0 %v998
  %1343 = vmatpush1.bf16.msra.mxu0 %v997
  %1344 = vmatprep.mubr.bf16.mxu0 %v46
  %1345 = vmatmul.mubr.bf16.gmra.mrb[0].mxu0 %v45
  %v1346 = vpop.f32.mrb[0].mxu0
  %v1347 = vadd.f32 %v1304, %v1346
  %v1348 = vpop.f32.mrb[0].mxu0
  %v1349 = vadd.f32 %v1306, %v1348
  %v1350 = vpop.f32.mrb[0].mxu0
  %v1351 = vadd.f32 %v1308, %v1350
  %v1352 = vpop.f32.mrb[0].mxu0
  %v1353 = vadd.f32 %v1310, %v1352
  %1354 = vdwg.mxu0
  %1355 = vmatprep.subr.bf16.mxu0 %v1002
  %1356 = vmatpush1.bf16.msra.mxu0 %v1001
  %1357 = vmatprep.subr.bf16.mxu0 %v1006
  %1358 = vmatpush1.bf16.msra.mxu0 %v1005
  %1359 = vmatprep.subr.bf16.mxu0 %v1010
  %1360 = vmatpush1.bf16.msra.mxu0 %v1009
  %1361 = vmatprep.subr.bf16.mxu0 %v1014
  %1362 = vmatpush1.bf16.msra.mxu0 %v1013
  %1363 = vmatprep.subr.bf16.mxu0 %v1018
  %1364 = vmatpush1.bf16.msra.mxu0 %v1017
  %1365 = vmatprep.subr.bf16.mxu0 %v1022
  %1366 = vmatpush1.bf16.msra.mxu0 %v1021
  %1367 = vmatprep.subr.bf16.mxu0 %v1026
  %1368 = vmatpush1.bf16.msra.mxu0 %v1025
  %1369 = vmatprep.subr.bf16.mxu0 %v1030
  %1370 = vmatpush1.bf16.msra.mxu0 %v1029
  %1371 = vmatprep.subr.bf16.mxu0 %v1034
  %1372 = vmatpush1.bf16.msra.mxu0 %v1033
  %1373 = vmatprep.subr.bf16.mxu0 %v1038
  %1374 = vmatpush1.bf16.msra.mxu0 %v1037
  %1375 = vmatprep.subr.bf16.mxu0 %v1042
  %1376 = vmatpush1.bf16.msra.mxu0 %v1041
  %1377 = vmatprep.subr.bf16.mxu0 %v1046
  %1378 = vmatpush1.bf16.msra.mxu0 %v1045
  %1379 = vmatprep.subr.bf16.mxu0 %v1050
  %1380 = vmatpush1.bf16.msra.mxu0 %v1049
  %1381 = vmatprep.subr.bf16.mxu0 %v1054
  %1382 = vmatpush1.bf16.msra.mxu0 %v1053
  %1383 = vmatprep.subr.bf16.mxu0 %v1058
  %1384 = vmatpush1.bf16.msra.mxu0 %v1057
  %1385 = vmatprep.subr.bf16.mxu0 %v1062
  %1386 = vmatpush1.bf16.msra.mxu0 %v1061
  %1387 = vmatprep.mubr.bf16.mxu0 %v48
  %1388 = vmatmul.mubr.bf16.gmra.mrb[0].mxu0 %v47
  %v1389 = vpop.f32.mrb[0].mxu0
  %v1390 = vadd.f32 %v1347, %v1389
  %v1391 = vpop.f32.mrb[0].mxu0
  %v1392 = vadd.f32 %v1349, %v1391
  %v1393 = vpop.f32.mrb[0].mxu0
  %v1394 = vadd.f32 %v1351, %v1393
  %v1395 = vpop.f32.mrb[0].mxu0
  %v1396 = vadd.f32 %v1353, %v1395
  %1397 = vdwg.mxu0
  %1398 = vmatprep.subr.bf16.mxu0 %v1066
  %1399 = vmatpush1.bf16.msra.mxu0 %v1065
  %1400 = vmatprep.subr.bf16.mxu0 0
  %1401 = vmatpush1.bf16.msra.mxu0 0
  %1402 = vmatprep.subr.bf16.mxu0 0
  %1403 = vmatpush1.bf16.msra.mxu0 0
  %1404 = vmatprep.subr.bf16.mxu0 0
  %1405 = vmatpush1.bf16.msra.mxu0 0
  %1406 = vmatprep.subr.bf16.mxu0 0
  %1407 = vmatpush1.bf16.msra.mxu0 0
  %1408 = vmatprep.subr.bf16.mxu0 0
  %1409 = vmatpush1.bf16.msra.mxu0 0
  %1410 = vmatprep.subr.bf16.mxu0 0
  %1411 = vmatpush1.bf16.msra.mxu0 0
  %1412 = vmatprep.subr.bf16.mxu0 0
  %1413 = vmatpush1.bf16.msra.mxu0 0
  %1414 = vmatprep.subr.bf16.mxu0 0
  %1415 = vmatpush1.bf16.msra.mxu0 0
  %1416 = vmatprep.subr.bf16.mxu0 0
  %1417 = vmatpush1.bf16.msra.mxu0 0
  %1418 = vmatprep.subr.bf16.mxu0 0
  %1419 = vmatpush1.bf16.msra.mxu0 0
  %1420 = vmatprep.subr.bf16.mxu0 0
  %1421 = vmatpush1.bf16.msra.mxu0 0
  %1422 = vmatprep.subr.bf16.mxu0 0
  %1423 = vmatpush1.bf16.msra.mxu0 0
  %1424 = vmatprep.subr.bf16.mxu0 0
  %1425 = vmatpush1.bf16.msra.mxu0 0
  %1426 = vmatprep.subr.bf16.mxu0 0
  %1427 = vmatpush1.bf16.msra.mxu0 0
  %1428 = vmatprep.subr.bf16.mxu0 0
  %1429 = vmatpush1.bf16.msra.mxu0 0
  %1430 = vmatprep.mubr.bf16.mxu0 0
  %1431 = vmatmul.mubr.bf16.gmra.mrb[0].mxu0 %v1267
  %v1432 = vpop.f32.mrb[0].mxu0
  %v1433 = vadd.f32 %v1390, %v1432
  %v1434 = vpop.f32.mrb[0].mxu0
  %v1435 = vadd.f32 %v1392, %v1434
  %v1436 = vpop.f32.mrb[0].mxu0
  %v1437 = vadd.f32 %v1394, %v1436
  %v1438 = vpop.f32.mrb[0].mxu0
  %v1439 = vadd.f32 %v1396, %v1438
  %1440 = vdwg.mxu0
  %1441 = vmatprep.subr.bf16.mxu0 %v876
  %1442 = vmatpush1.bf16.msra.mxu0 %v875
  %1443 = vmatprep.subr.bf16.mxu0 %v880
  %1444 = vmatpush1.bf16.msra.mxu0 %v879
  %1445 = vmatprep.subr.bf16.mxu0 %v884
  %1446 = vmatpush1.bf16.msra.mxu0 %v883
  %1447 = vmatprep.subr.bf16.mxu0 %v888
  %1448 = vmatpush1.bf16.msra.mxu0 %v887
  %1449 = vmatprep.subr.bf16.mxu0 %v892
  %1450 = vmatpush1.bf16.msra.mxu0 %v891
  %1451 = vmatprep.subr.bf16.mxu0 %v896
  %1452 = vmatpush1.bf16.msra.mxu0 %v895
  %1453 = vmatprep.subr.bf16.mxu0 %v900
  %1454 = vmatpush1.bf16.msra.mxu0 %v899
  %1455 = vmatprep.subr.bf16.mxu0 %v904
  %1456 = vmatpush1.bf16.msra.mxu0 %v903
  %1457 = vmatprep.subr.bf16.mxu0 %v908
  %1458 = vmatpush1.bf16.msra.mxu0 %v907
  %1459 = vmatprep.subr.bf16.mxu0 %v912
  %1460 = vmatpush1.bf16.msra.mxu0 %v911
  %1461 = vmatprep.subr.bf16.mxu0 %v916
  %1462 = vmatpush1.bf16.msra.mxu0 %v915
  %1463 = vmatprep.subr.bf16.mxu0 %v920
  %1464 = vmatpush1.bf16.msra.mxu0 %v919
  %1465 = vmatprep.subr.bf16.mxu0 %v924
  %1466 = vmatpush1.bf16.msra.mxu0 %v923
  %1467 = vmatprep.subr.bf16.mxu0 %v928
  %1468 = vmatpush1.bf16.msra.mxu0 %v927
  %1469 = vmatprep.subr.bf16.mxu0 %v932
  %1470 = vmatpush1.bf16.msra.mxu0 %v931
  %1471 = vmatprep.subr.bf16.mxu0 %v936
  %1472 = vmatpush1.bf16.msra.mxu0 %v935
  %1473 = vmatprep.mubr.bf16.mxu0 %v44
  %1474 = vmatmul.mubr.bf16.gmra.mrb[0].mxu0 %v43
  %v1475 = vpop.f32.mrb[0].mxu0
  %v1476 = vadd.f32 %v280, %v1475
  %v1477 = vpop.f32.mrb[0].mxu0
  %v1478 = vadd.f32 %v284, %v1477
  %v1479 = vpop.f32.mrb[0].mxu0
  %v1480 = vadd.f32 %v280, %v1479
  %v1481 = vpop.f32.mrb[0].mxu0
  %v1482 = vadd.f32 %v284, %v1481
  %1483 = vdwg.mxu0
  %1484 = vmatprep.subr.bf16.mxu0 %v940
  %1485 = vmatpush1.bf16.msra.mxu0 %v939
  %1486 = vmatprep.subr.bf16.mxu0 %v944
  %1487 = vmatpush1.bf16.msra.mxu0 %v943
  %1488 = vmatprep.subr.bf16.mxu0 %v948
  %1489 = vmatpush1.bf16.msra.mxu0 %v947
  %1490 = vmatprep.subr.bf16.mxu0 %v952
  %1491 = vmatpush1.bf16.msra.mxu0 %v951
  %1492 = vmatprep.subr.bf16.mxu0 %v956
  %1493 = vmatpush1.bf16.msra.mxu0 %v955
  %1494 = vmatprep.subr.bf16.mxu0 %v960
  %1495 = vmatpush1.bf16.msra.mxu0 %v959
  %1496 = vmatprep.subr.bf16.mxu0 %v964
  %1497 = vmatpush1.bf16.msra.mxu0 %v963
  %1498 = vmatprep.subr.bf16.mxu0 %v968
  %1499 = vmatpush1.bf16.msra.mxu0 %v967
  %1500 = vmatprep.subr.bf16.mxu0 %v972
  %1501 = vmatpush1.bf16.msra.mxu0 %v971
  %1502 = vmatprep.subr.bf16.mxu0 %v976
  %1503 = vmatpush1.bf16.msra.mxu0 %v975
  %1504 = vmatprep.subr.bf16.mxu0 %v980
  %1505 = vmatpush1.bf16.msra.mxu0 %v979
  %1506 = vmatprep.subr.bf16.mxu0 %v984
  %1507 = vmatpush1.bf16.msra.mxu0 %v983
  %1508 = vmatprep.subr.bf16.mxu0 %v988
  %1509 = vmatpush1.bf16.msra.mxu0 %v987
  %1510 = vmatprep.subr.bf16.mxu0 %v992
  %1511 = vmatpush1.bf16.msra.mxu0 %v991
  %1512 = vmatprep.subr.bf16.mxu0 %v996
  %1513 = vmatpush1.bf16.msra.mxu0 %v995
  %1514 = vmatprep.subr.bf16.mxu0 %v1000
  %1515 = vmatpush1.bf16.msra.mxu0 %v999
  %1516 = vmatprep.mubr.bf16.mxu0 %v46
  %1517 = vmatmul.mubr.bf16.gmra.mrb[0].mxu0 %v45
  %v1518 = vpop.f32.mrb[0].mxu0
  %v1519 = vadd.f32 %v1476, %v1518
  %v1520 = vpop.f32.mrb[0].mxu0
  %v1521 = vadd.f32 %v1478, %v1520
  %v1522 = vpop.f32.mrb[0].mxu0
  %v1523 = vadd.f32 %v1480, %v1522
  %v1524 = vpop.f32.mrb[0].mxu0
  %v1525 = vadd.f32 %v1482, %v1524
  %1526 = vdwg.mxu0
  %1527 = vmatprep.subr.bf16.mxu0 %v1004
  %1528 = vmatpush1.bf16.msra.mxu0 %v1003
  %1529 = vmatprep.subr.bf16.mxu0 %v1008
  %1530 = vmatpush1.bf16.msra.mxu0 %v1007
  %1531 = vmatprep.subr.bf16.mxu0 %v1012
  %1532 = vmatpush1.bf16.msra.mxu0 %v1011
  %1533 = vmatprep.subr.bf16.mxu0 %v1016
  %1534 = vmatpush1.bf16.msra.mxu0 %v1015
  %1535 = vmatprep.subr.bf16.mxu0 %v1020
  %1536 = vmatpush1.bf16.msra.mxu0 %v1019
  %1537 = vmatprep.subr.bf16.mxu0 %v1024
  %1538 = vmatpush1.bf16.msra.mxu0 %v1023
  %1539 = vmatprep.subr.bf16.mxu0 %v1028
  %1540 = vmatpush1.bf16.msra.mxu0 %v1027
  %1541 = vmatprep.subr.bf16.mxu0 %v1032
  %1542 = vmatpush1.bf16.msra.mxu0 %v1031
  %1543 = vmatprep.subr.bf16.mxu0 %v1036
  %1544 = vmatpush1.bf16.msra.mxu0 %v1035
  %1545 = vmatprep.subr.bf16.mxu0 %v1040
  %1546 = vmatpush1.bf16.msra.mxu0 %v1039
  %1547 = vmatprep.subr.bf16.mxu0 %v1044
  %1548 = vmatpush1.bf16.msra.mxu0 %v1043
  %1549 = vmatprep.subr.bf16.mxu0 %v1048
  %1550 = vmatpush1.bf16.msra.mxu0 %v1047
  %1551 = vmatprep.subr.bf16.mxu0 %v1052
  %1552 = vmatpush1.bf16.msra.mxu0 %v1051
  %1553 = vmatprep.subr.bf16.mxu0 %v1056
  %1554 = vmatpush1.bf16.msra.mxu0 %v1055
  %1555 = vmatprep.subr.bf16.mxu0 %v1060
  %1556 = vmatpush1.bf16.msra.mxu0 %v1059
  %1557 = vmatprep.subr.bf16.mxu0 %v1064
  %1558 = vmatpush1.bf16.msra.mxu0 %v1063
  %1559 = vmatprep.mubr.bf16.mxu0 %v48
  %1560 = vmatmul.mubr.bf16.gmra.mrb[0].mxu0 %v47
  %v1561 = vpop.f32.mrb[0].mxu0
  %v1562 = vadd.f32 %v1519, %v1561
  %v1563 = vpop.f32.mrb[0].mxu0
  %v1564 = vadd.f32 %v1521, %v1563
  %v1565 = vpop.f32.mrb[0].mxu0
  %v1566 = vadd.f32 %v1523, %v1565
  %v1567 = vpop.f32.mrb[0].mxu0
  %v1568 = vadd.f32 %v1525, %v1567
  %1569 = vdwg.mxu0
  %1570 = vmatprep.subr.bf16.mxu0 %v1068
  %1571 = vmatpush1.bf16.msra.mxu0 %v1067
  %1572 = vmatprep.subr.bf16.mxu0 0
  %1573 = vmatpush1.bf16.msra.mxu0 0
  %1574 = vmatprep.subr.bf16.mxu0 0
  %1575 = vmatpush1.bf16.msra.mxu0 0
  %1576 = vmatprep.subr.bf16.mxu0 0
  %1577 = vmatpush1.bf16.msra.mxu0 0
  %1578 = vmatprep.subr.bf16.mxu0 0
  %1579 = vmatpush1.bf16.msra.mxu0 0
  %1580 = vmatprep.subr.bf16.mxu0 0
  %1581 = vmatpush1.bf16.msra.mxu0 0
  %1582 = vmatprep.subr.bf16.mxu0 0
  %1583 = vmatpush1.bf16.msra.mxu0 0
  %1584 = vmatprep.subr.bf16.mxu0 0
  %1585 = vmatpush1.bf16.msra.mxu0 0
  %1586 = vmatprep.subr.bf16.mxu0 0
  %1587 = vmatpush1.bf16.msra.mxu0 0
  %1588 = vmatprep.subr.bf16.mxu0 0
  %1589 = vmatpush1.bf16.msra.mxu0 0
  %1590 = vmatprep.subr.bf16.mxu0 0
  %1591 = vmatpush1.bf16.msra.mxu0 0
  %1592 = vmatprep.subr.bf16.mxu0 0
  %1593 = vmatpush1.bf16.msra.mxu0 0
  %1594 = vmatprep.subr.bf16.mxu0 0
  %1595 = vmatpush1.bf16.msra.mxu0 0
  %1596 = vmatprep.subr.bf16.mxu0 0
  %1597 = vmatpush1.bf16.msra.mxu0 0
  %1598 = vmatprep.subr.bf16.mxu0 0
  %1599 = vmatpush1.bf16.msra.mxu0 0
  %1600 = vmatprep.subr.bf16.mxu0 0
  %1601 = vmatpush1.bf16.msra.mxu0 0
  %1602 = vmatprep.mubr.bf16.mxu0 0
  %1603 = vmatmul.mubr.bf16.gmra.mrb[0].mxu0 %v1267
  %v1604 = vpop.f32.mrb[0].mxu0
  %v1605 = vadd.f32 %v1562, %v1604
  %v1606 = vpop.f32.mrb[0].mxu0
  %v1607 = vadd.f32 %v1564, %v1606
  %v1608 = vpop.f32.mrb[0].mxu0
  %v1609 = vadd.f32 %v1566, %v1608
  %v1610 = vpop.f32.mrb[0].mxu0
  %v1611 = vadd.f32 %v1568, %v1610
  %1612 = vdwg.mxu0
  %v1613 = vmax.f32 %v1433, 0.0
  %v1614 = vmax.f32 %v1435, 0.0
  %v1615 = vmax.f32 %v1605, 0.0
  %v1616 = vmax.f32 %v1607, 0.0
  %v1617 = vmax.f32 %v1437, 0.0
  %v1618 = vmax.f32 %v1439, 0.0
  %v1619 = vmax.f32 %v1609, 0.0
  %v1620 = vmax.f32 %v1611, 0.0
  %v1621 = vpack.c.bf16 %v1617, %v1613
  %v1622 = vpack.c.bf16 %v1618, %v1614
  %v1623 = vpack.c.bf16 %v1619, %v1615
  %v1624 = vpack.c.bf16 %v1620, %v1616
  %v1625 = vld [vmem:[%s3] sm:$0xff]
  %v1626 = vld [vmem:[%s3 + $0x8] sm:$0xff]
  %v1627 = vld [vmem:[%s3 + $0x10] sm:$0xff]
  %v1628 = vld [vmem:[%s3 + $0x18] sm:$0xff]
  %v1629 = vld [vmem:[%s3 + $0x20] sm:$0xff]
  %v1630 = vld [vmem:[%s3 + $0x28] sm:$0xff]
  %v1631 = vld [vmem:[%s3 + $0x30] sm:$0xff]
  %v1632 = vld [vmem:[%s3 + $0x38] sm:$0xff]
  %v1633 = vld [vmem:[%s3 + $0x40] sm:$0xff]
  %v1634 = vld [vmem:[%s3 + $0x48] sm:$0xff]
  %v1635 = vld [vmem:[%s3 + $0x50] sm:$0xff]
  %v1636 = vld [vmem:[%s3 + $0x58] sm:$0xff]
  %v1637 = vld [vmem:[%s3 + $0x60] sm:$0xff]
  %v1638 = vld [vmem:[%s3 + $0x68] sm:$0xff]
  %v1639 = vld [vmem:[%s3 + $0x70] sm:$0xff]
  %v1640 = vld [vmem:[%s3 + $0x78] sm:$0xff]
  %v1641 = vld [vmem:[%s3 + $0x80] sm:$0xff]
  %v1642 = vld [vmem:[%s3 + $0x88] sm:$0xff]
  %v1643 = vld [vmem:[%s3 + $0x90] sm:$0xff]
  %v1644 = vld [vmem:[%s3 + $0x98] sm:$0xff]
  %v1645 = vld [vmem:[%s3 + $0xa0] sm:$0xff]
  %v1646 = vld [vmem:[%s3 + $0xa8] sm:$0xff]
  %v1647 = vld [vmem:[%s3 + $0xb0] sm:$0xff]
  %v1648 = vld [vmem:[%s3 + $0xb8] sm:$0xff]
  %v1649 = vld [vmem:[%s3 + $0xc0] sm:$0xff]
  %v1650 = vld [vmem:[%s3 + $0xc8] sm:$0xff]
  %v1651 = vld [vmem:[%s3 + $0xd0] sm:$0xff]
  %v1652 = vld [vmem:[%s3 + $0xd8] sm:$0xff]
  %v1653 = vld [vmem:[%s3 + $0xe0] sm:$0xff]
  %v1654 = vld [vmem:[%s3 + $0xe8] sm:$0xff]
  %v1655 = vld [vmem:[%s3 + $0xf0] sm:$0xff]
  %v1656 = vld [vmem:[%s3 + $0xf8] sm:$0xff]
  %v1657 = vld [vmem:[%s3 + $0x100] sm:$0xff]
  %v1658 = vld [vmem:[%s3 + $0x108] sm:$0xff]
  %v1659 = vld [vmem:[%s3 + $0x110] sm:$0xff]
  %v1660 = vld [vmem:[%s3 + $0x118] sm:$0xff]
  %v1661 = vld [vmem:[%s3 + $0x120] sm:$0xff]
  %v1662 = vld [vmem:[%s3 + $0x128] sm:$0xff]
  %v1663 = vld [vmem:[%s3 + $0x130] sm:$0xff]
  %v1664 = vld [vmem:[%s3 + $0x138] sm:$0xff]
  %v1665 = vld [vmem:[%s3 + $0x140] sm:$0xff]
  %v1666 = vld [vmem:[%s3 + $0x148] sm:$0xff]
  %v1667 = vld [vmem:[%s3 + $0x150] sm:$0xff]
  %v1668 = vld [vmem:[%s3 + $0x158] sm:$0xff]
  %v1669 = vld [vmem:[%s3 + $0x160] sm:$0xff]
  %v1670 = vld [vmem:[%s3 + $0x168] sm:$0xff]
  %v1671 = vld [vmem:[%s3 + $0x170] sm:$0xff]
  %v1672 = vld [vmem:[%s3 + $0x178] sm:$0xff]
  %v1673 = vld [vmem:[%s3 + $0x180] sm:$0xff]
  %v1674 = vld [vmem:[%s3 + $0x188] sm:$0xff]
  %v1675 = vld [vmem:[%s3 + $0x190] sm:$0xff]
  %v1676 = vld [vmem:[%s3 + $0x198] sm:$0xff]
  %v1677 = vld [vmem:[%s3 + $0x1a0] sm:$0xff]
  %v1678 = vld [vmem:[%s3 + $0x1a8] sm:$0xff]
  %v1679 = vld [vmem:[%s3 + $0x1b0] sm:$0xff]
  %v1680 = vld [vmem:[%s3 + $0x1b8] sm:$0xff]
  %v1681 = vld [vmem:[%s3 + $0x1c0] sm:$0xff]
  %v1682 = vld [vmem:[%s3 + $0x1c8] sm:$0xff]
  %v1683 = vld [vmem:[%s3 + $0x1d0] sm:$0xff]
  %v1684 = vld [vmem:[%s3 + $0x1d8] sm:$0xff]
  %v1685 = vld [vmem:[%s3 + $0x1e0] sm:$0xff]
  %v1686 = vld [vmem:[%s3 + $0x1e8] sm:$0xff]
  %v1687 = vld [vmem:[%s3 + $0x1f0] sm:$0xff]
  %v1688 = vld [vmem:[%s3 + $0x1f8] sm:$0xff]
  %v1689 = vld [vmem:[%s3 + $0x200] sm:$0xff]
  %v1690 = vld [vmem:[%s3 + $0x208] sm:$0xff]
  %v1691 = vld [vmem:[%s3 + $0x210] sm:$0xff]
  %v1692 = vld [vmem:[%s3 + $0x218] sm:$0xff]
  %v1693 = vld [vmem:[%s3 + $0x220] sm:$0xff]
  %v1694 = vld [vmem:[%s3 + $0x228] sm:$0xff]
  %v1695 = vld [vmem:[%s3 + $0x230] sm:$0xff]
  %v1696 = vld [vmem:[%s3 + $0x238] sm:$0xff]
  %v1697 = vld [vmem:[%s3 + $0x240] sm:$0xff]
  %v1698 = vld [vmem:[%s3 + $0x248] sm:$0xff]
  %v1699 = vld [vmem:[%s3 + $0x250] sm:$0xff]
  %v1700 = vld [vmem:[%s3 + $0x258] sm:$0xff]
  %v1701 = vld [vmem:[%s3 + $0x260] sm:$0xff]
  %v1702 = vld [vmem:[%s3 + $0x268] sm:$0xff]
  %v1703 = vld [vmem:[%s3 + $0x270] sm:$0xff]
  %v1704 = vld [vmem:[%s3 + $0x278] sm:$0xff]
  %v1705 = vld [vmem:[%s3 + $0x280] sm:$0xff]
  %v1706 = vld [vmem:[%s3 + $0x288] sm:$0xff]
  %v1707 = vld [vmem:[%s3 + $0x290] sm:$0xff]
  %v1708 = vld [vmem:[%s3 + $0x298] sm:$0xff]
  %v1709 = vld [vmem:[%s3 + $0x2a0] sm:$0xff]
  %v1710 = vld [vmem:[%s3 + $0x2a8] sm:$0xff]
  %v1711 = vld [vmem:[%s3 + $0x2b0] sm:$0xff]
  %v1712 = vld [vmem:[%s3 + $0x2b8] sm:$0xff]
  %v1713 = vld [vmem:[%s3 + $0x2c0] sm:$0xff]
  %v1714 = vld [vmem:[%s3 + $0x2c8] sm:$0xff]
  %v1715 = vld [vmem:[%s3 + $0x2d0] sm:$0xff]
  %v1716 = vld [vmem:[%s3 + $0x2d8] sm:$0xff]
  %v1717 = vld [vmem:[%s3 + $0x2e0] sm:$0xff]
  %v1718 = vld [vmem:[%s3 + $0x2e8] sm:$0xff]
  %v1719 = vld [vmem:[%s3 + $0x2f0] sm:$0xff]
  %v1720 = vld [vmem:[%s3 + $0x2f8] sm:$0xff]
  %v1721 = vld [vmem:[%s3 + $0x300] sm:$0xff]
  %v1722 = vld [vmem:[%s3 + $0x308] sm:$0xff]
  %v1723 = vld [vmem:[%s4] sm:$0xf]
  %v1724 = vunpack.c.l.bf16 %v1723
  %v1726 = vlaneseq
  %v1727 = vshrl.u32 %v1726, 7
  %v1728 = vsub.s32 0, %v1727
  %v1729 = vrot.slane %v1724, %v1728
  %v1730 = vlaneseq
  %v1731 = vshrl.u32 %v1730, 7
  %v1732 = vsub.s32 2, %v1731
  %v1733 = vrot.slane %v1724, %v1732
  %v1734 = vlaneseq
  %v1735 = vshrl.u32 %v1734, 7
  %v1736 = vsub.s32 4, %v1735
  %v1737 = vrot.slane %v1724, %v1736
  %v1738 = vlaneseq
  %v1739 = vshrl.u32 %v1738, 7
  %v1740 = vsub.s32 6, %v1739
  %v1741 = vrot.slane %v1724, %v1740
  %v1746 = vlaneseq
  %v1747 = vshrl.u32 %v1746, 7
  %v1748 = vsub.s32 0, %v1747
  %v1749 = vrot.slane %v1729, %v1748
  %v1750 = vlaneseq
  %v1751 = vshrl.u32 %v1750, 7
  %v1752 = vsub.s32 0, %v1751
  %v1753 = vrot.slane %v1733, %v1752
  %v1754 = vlaneseq
  %v1755 = vshrl.u32 %v1754, 7
  %v1756 = vsub.s32 0, %v1755
  %v1757 = vrot.slane %v1737, %v1756
  %v1758 = vlaneseq
  %v1759 = vshrl.u32 %v1758, 7
  %v1760 = vsub.s32 0, %v1759
  %v1761 = vrot.slane %v1741, %v1760
  %v1860 = vunpack.c.l.b16 %v1625
  %v1861 = vunpack.c.h.b16 %v1625
  %v1862 = vunpack.c.l.b16 %v1626
  %v1863 = vunpack.c.h.b16 %v1626
  %v1864 = vunpack.c.l.b16 %v1627
  %v1865 = vunpack.c.h.b16 %v1627
  %v1866 = vunpack.c.l.b16 %v1628
  %v1867 = vunpack.c.h.b16 %v1628
  %v1868 = vunpack.c.l.b16 %v1629
  %v1869 = vunpack.c.h.b16 %v1629
  %v1870 = vunpack.c.l.b16 %v1630
  %v1871 = vunpack.c.h.b16 %v1630
  %v1872 = vunpack.c.l.b16 %v1631
  %v1873 = vunpack.c.h.b16 %v1631
  %v1874 = vunpack.c.l.b16 %v1632
  %v1875 = vunpack.c.h.b16 %v1632
  %v1876 = vunpack.c.l.b16 %v1633
  %v1877 = vunpack.c.h.b16 %v1633
  %v1878 = vunpack.c.l.b16 %v1634
  %v1879 = vunpack.c.h.b16 %v1634
  %v1880 = vunpack.c.l.b16 %v1635
  %v1881 = vunpack.c.h.b16 %v1635
  %v1882 = vunpack.c.l.b16 %v1636
  %v1883 = vunpack.c.h.b16 %v1636
  %v1884 = vunpack.c.l.b16 %v1637
  %v1885 = vunpack.c.h.b16 %v1637
  %v1886 = vunpack.c.l.b16 %v1638
  %v1887 = vunpack.c.h.b16 %v1638
  %v1888 = vunpack.c.l.b16 %v1639
  %v1889 = vunpack.c.h.b16 %v1639
  %v1890 = vunpack.c.l.b16 %v1640
  %v1891 = vunpack.c.h.b16 %v1640
  %v1892 = vunpack.c.l.b16 %v1641
  %v1893 = vunpack.c.h.b16 %v1641
  %v1894 = vunpack.c.l.b16 %v1642
  %v1895 = vunpack.c.h.b16 %v1642
  %v1896 = vunpack.c.l.b16 %v1643
  %v1897 = vunpack.c.h.b16 %v1643
  %v1898 = vunpack.c.l.b16 %v1644
  %v1899 = vunpack.c.h.b16 %v1644
  %v1900 = vunpack.c.l.b16 %v1645
  %v1901 = vunpack.c.h.b16 %v1645
  %v1902 = vunpack.c.l.b16 %v1646
  %v1903 = vunpack.c.h.b16 %v1646
  %v1904 = vunpack.c.l.b16 %v1647
  %v1905 = vunpack.c.h.b16 %v1647
  %v1906 = vunpack.c.l.b16 %v1648
  %v1907 = vunpack.c.h.b16 %v1648
  %v1908 = vunpack.c.l.b16 %v1649
  %v1909 = vunpack.c.h.b16 %v1649
  %v1910 = vunpack.c.l.b16 %v1650
  %v1911 = vunpack.c.h.b16 %v1650
  %v1912 = vunpack.c.l.b16 %v1651
  %v1913 = vunpack.c.h.b16 %v1651
  %v1914 = vunpack.c.l.b16 %v1652
  %v1915 = vunpack.c.h.b16 %v1652
  %v1916 = vunpack.c.l.b16 %v1653
  %v1917 = vunpack.c.h.b16 %v1653
  %v1918 = vunpack.c.l.b16 %v1654
  %v1919 = vunpack.c.h.b16 %v1654
  %v1920 = vunpack.c.l.b16 %v1655
  %v1921 = vunpack.c.h.b16 %v1655
  %v1922 = vunpack.c.l.b16 %v1656
  %v1923 = vunpack.c.h.b16 %v1656
  %v1924 = vunpack.c.l.b16 %v1657
  %v1925 = vunpack.c.h.b16 %v1657
  %v1926 = vunpack.c.l.b16 %v1658
  %v1927 = vunpack.c.h.b16 %v1658
  %v1928 = vunpack.c.l.b16 %v1659
  %v1929 = vunpack.c.h.b16 %v1659
  %v1930 = vunpack.c.l.b16 %v1660
  %v1931 = vunpack.c.h.b16 %v1660
  %v1932 = vunpack.c.l.b16 %v1661
  %v1933 = vunpack.c.h.b16 %v1661
  %v1934 = vunpack.c.l.b16 %v1662
  %v1935 = vunpack.c.h.b16 %v1662
  %v1936 = vunpack.c.l.b16 %v1663
  %v1937 = vunpack.c.h.b16 %v1663
  %v1938 = vunpack.c.l.b16 %v1664
  %v1939 = vunpack.c.h.b16 %v1664
  %v1940 = vunpack.c.l.b16 %v1665
  %v1941 = vunpack.c.h.b16 %v1665
  %v1942 = vunpack.c.l.b16 %v1666
  %v1943 = vunpack.c.h.b16 %v1666
  %v1944 = vunpack.c.l.b16 %v1667
  %v1945 = vunpack.c.h.b16 %v1667
  %v1946 = vunpack.c.l.b16 %v1668
  %v1947 = vunpack.c.h.b16 %v1668
  %v1948 = vunpack.c.l.b16 %v1669
  %v1949 = vunpack.c.h.b16 %v1669
  %v1950 = vunpack.c.l.b16 %v1670
  %v1951 = vunpack.c.h.b16 %v1670
  %v1952 = vunpack.c.l.b16 %v1671
  %v1953 = vunpack.c.h.b16 %v1671
  %v1954 = vunpack.c.l.b16 %v1672
  %v1955 = vunpack.c.h.b16 %v1672
  %v1956 = vunpack.c.l.b16 %v1673
  %v1957 = vunpack.c.h.b16 %v1673
  %v1958 = vunpack.c.l.b16 %v1674
  %v1959 = vunpack.c.h.b16 %v1674
  %v1960 = vunpack.c.l.b16 %v1675
  %v1961 = vunpack.c.h.b16 %v1675
  %v1962 = vunpack.c.l.b16 %v1676
  %v1963 = vunpack.c.h.b16 %v1676
  %v1964 = vunpack.c.l.b16 %v1677
  %v1965 = vunpack.c.h.b16 %v1677
  %v1966 = vunpack.c.l.b16 %v1678
  %v1967 = vunpack.c.h.b16 %v1678
  %v1968 = vunpack.c.l.b16 %v1679
  %v1969 = vunpack.c.h.b16 %v1679
  %v1970 = vunpack.c.l.b16 %v1680
  %v1971 = vunpack.c.h.b16 %v1680
  %v1972 = vunpack.c.l.b16 %v1681
  %v1973 = vunpack.c.h.b16 %v1681
  %v1974 = vunpack.c.l.b16 %v1682
  %v1975 = vunpack.c.h.b16 %v1682
  %v1976 = vunpack.c.l.b16 %v1683
  %v1977 = vunpack.c.h.b16 %v1683
  %v1978 = vunpack.c.l.b16 %v1684
  %v1979 = vunpack.c.h.b16 %v1684
  %v1980 = vunpack.c.l.b16 %v1685
  %v1981 = vunpack.c.h.b16 %v1685
  %v1982 = vunpack.c.l.b16 %v1686
  %v1983 = vunpack.c.h.b16 %v1686
  %v1984 = vunpack.c.l.b16 %v1687
  %v1985 = vunpack.c.h.b16 %v1687
  %v1986 = vunpack.c.l.b16 %v1688
  %v1987 = vunpack.c.h.b16 %v1688
  %v1988 = vunpack.c.l.b16 %v1689
  %v1989 = vunpack.c.h.b16 %v1689
  %v1990 = vunpack.c.l.b16 %v1690
  %v1991 = vunpack.c.h.b16 %v1690
  %v1992 = vunpack.c.l.b16 %v1691
  %v1993 = vunpack.c.h.b16 %v1691
  %v1994 = vunpack.c.l.b16 %v1692
  %v1995 = vunpack.c.h.b16 %v1692
  %v1996 = vunpack.c.l.b16 %v1693
  %v1997 = vunpack.c.h.b16 %v1693
  %v1998 = vunpack.c.l.b16 %v1694
  %v1999 = vunpack.c.h.b16 %v1694
  %v2000 = vunpack.c.l.b16 %v1695
  %v2001 = vunpack.c.h.b16 %v1695
  %v2002 = vunpack.c.l.b16 %v1696
  %v2003 = vunpack.c.h.b16 %v1696
  %v2004 = vunpack.c.l.b16 %v1697
  %v2005 = vunpack.c.h.b16 %v1697
  %v2006 = vunpack.c.l.b16 %v1698
  %v2007 = vunpack.c.h.b16 %v1698
  %v2008 = vunpack.c.l.b16 %v1699
  %v2009 = vunpack.c.h.b16 %v1699
  %v2010 = vunpack.c.l.b16 %v1700
  %v2011 = vunpack.c.h.b16 %v1700
  %v2012 = vunpack.c.l.b16 %v1701
  %v2013 = vunpack.c.h.b16 %v1701
  %v2014 = vunpack.c.l.b16 %v1702
  %v2015 = vunpack.c.h.b16 %v1702
  %v2016 = vunpack.c.l.b16 %v1703
  %v2017 = vunpack.c.h.b16 %v1703
  %v2018 = vunpack.c.l.b16 %v1704
  %v2019 = vunpack.c.h.b16 %v1704
  %v2020 = vunpack.c.l.b16 %v1705
  %v2021 = vunpack.c.h.b16 %v1705
  %v2022 = vunpack.c.l.b16 %v1706
  %v2023 = vunpack.c.h.b16 %v1706
  %v2024 = vunpack.c.l.b16 %v1707
  %v2025 = vunpack.c.h.b16 %v1707
  %v2026 = vunpack.c.l.b16 %v1708
  %v2027 = vunpack.c.h.b16 %v1708
  %v2028 = vunpack.c.l.b16 %v1709
  %v2029 = vunpack.c.h.b16 %v1709
  %v2030 = vunpack.c.l.b16 %v1710
  %v2031 = vunpack.c.h.b16 %v1710
  %v2032 = vunpack.c.l.b16 %v1711
  %v2033 = vunpack.c.h.b16 %v1711
  %v2034 = vunpack.c.l.b16 %v1712
  %v2035 = vunpack.c.h.b16 %v1712
  %v2036 = vunpack.c.l.b16 %v1713
  %v2037 = vunpack.c.h.b16 %v1713
  %v2038 = vunpack.c.l.b16 %v1714
  %v2039 = vunpack.c.h.b16 %v1714
  %v2040 = vunpack.c.l.b16 %v1715
  %v2041 = vunpack.c.h.b16 %v1715
  %v2042 = vunpack.c.l.b16 %v1716
  %v2043 = vunpack.c.h.b16 %v1716
  %v2044 = vunpack.c.l.b16 %v1717
  %v2045 = vunpack.c.h.b16 %v1717
  %v2046 = vunpack.c.l.b16 %v1718
  %v2047 = vunpack.c.h.b16 %v1718
  %v2048 = vunpack.c.l.b16 %v1719
  %v2049 = vunpack.c.h.b16 %v1719
  %v2050 = vunpack.c.l.b16 %v1720
  %v2051 = vunpack.c.h.b16 %v1720
  %v2052 = vunpack.c.l.b16 %v1721
  %v2053 = vunpack.c.h.b16 %v1721
  %v2054 = vunpack.c.l.b16 %v1722
  %v2055 = vunpack.c.h.b16 %v1722
  %v2056 = vpack.c.b16 %v1864, %v1860
  %v2057 = vpack.c.b16 %v1865, %v1861
  %v2058 = vpack.c.b16 %v1866, %v1862
  %v2059 = vpack.c.b16 %v1867, %v1863
  %v2060 = vpack.c.b16 %v1872, %v1868
  %v2061 = vpack.c.b16 %v1873, %v1869
  %v2062 = vpack.c.b16 %v1874, %v1870
  %v2063 = vpack.c.b16 %v1875, %v1871
  %v2064 = vpack.c.b16 %v1880, %v1876
  %v2065 = vpack.c.b16 %v1881, %v1877
  %v2066 = vpack.c.b16 %v1882, %v1878
  %v2067 = vpack.c.b16 %v1883, %v1879
  %v2068 = vpack.c.b16 %v1888, %v1884
  %v2069 = vpack.c.b16 %v1889, %v1885
  %v2070 = vpack.c.b16 %v1890, %v1886
  %v2071 = vpack.c.b16 %v1891, %v1887
  %v2072 = vpack.c.b16 %v1896, %v1892
  %v2073 = vpack.c.b16 %v1897, %v1893
  %v2074 = vpack.c.b16 %v1898, %v1894
  %v2075 = vpack.c.b16 %v1899, %v1895
  %v2076 = vpack.c.b16 %v1904, %v1900
  %v2077 = vpack.c.b16 %v1905, %v1901
  %v2078 = vpack.c.b16 %v1906, %v1902
  %v2079 = vpack.c.b16 %v1907, %v1903
  %v2080 = vpack.c.b16 %v1912, %v1908
  %v2081 = vpack.c.b16 %v1913, %v1909
  %v2082 = vpack.c.b16 %v1914, %v1910
  %v2083 = vpack.c.b16 %v1915, %v1911
  %v2084 = vpack.c.b16 %v1920, %v1916
  %v2085 = vpack.c.b16 %v1921, %v1917
  %v2086 = vpack.c.b16 %v1922, %v1918
  %v2087 = vpack.c.b16 %v1923, %v1919
  %v2088 = vpack.c.b16 %v1928, %v1924
  %v2089 = vpack.c.b16 %v1929, %v1925
  %v2090 = vpack.c.b16 %v1930, %v1926
  %v2091 = vpack.c.b16 %v1931, %v1927
  %v2092 = vpack.c.b16 %v1936, %v1932
  %v2093 = vpack.c.b16 %v1937, %v1933
  %v2094 = vpack.c.b16 %v1938, %v1934
  %v2095 = vpack.c.b16 %v1939, %v1935
  %v2096 = vpack.c.b16 %v1944, %v1940
  %v2097 = vpack.c.b16 %v1945, %v1941
  %v2098 = vpack.c.b16 %v1946, %v1942
  %v2099 = vpack.c.b16 %v1947, %v1943
  %v2100 = vpack.c.b16 %v1952, %v1948
  %v2101 = vpack.c.b16 %v1953, %v1949
  %v2102 = vpack.c.b16 %v1954, %v1950
  %v2103 = vpack.c.b16 %v1955, %v1951
  %v2104 = vpack.c.b16 %v1960, %v1956
  %v2105 = vpack.c.b16 %v1961, %v1957
  %v2106 = vpack.c.b16 %v1962, %v1958
  %v2107 = vpack.c.b16 %v1963, %v1959
  %v2108 = vpack.c.b16 %v1968, %v1964
  %v2109 = vpack.c.b16 %v1969, %v1965
  %v2110 = vpack.c.b16 %v1970, %v1966
  %v2111 = vpack.c.b16 %v1971, %v1967
  %v2112 = vpack.c.b16 %v1976, %v1972
  %v2113 = vpack.c.b16 %v1977, %v1973
  %v2114 = vpack.c.b16 %v1978, %v1974
  %v2115 = vpack.c.b16 %v1979, %v1975
  %v2116 = vpack.c.b16 %v1984, %v1980
  %v2117 = vpack.c.b16 %v1985, %v1981
  %v2118 = vpack.c.b16 %v1986, %v1982
  %v2119 = vpack.c.b16 %v1987, %v1983
  %v2120 = vpack.c.b16 %v1992, %v1988
  %v2121 = vpack.c.b16 %v1993, %v1989
  %v2122 = vpack.c.b16 %v1994, %v1990
  %v2123 = vpack.c.b16 %v1995, %v1991
  %v2124 = vpack.c.b16 %v2000, %v1996
  %v2125 = vpack.c.b16 %v2001, %v1997
  %v2126 = vpack.c.b16 %v2002, %v1998
  %v2127 = vpack.c.b16 %v2003, %v1999
  %v2128 = vpack.c.b16 %v2008, %v2004
  %v2129 = vpack.c.b16 %v2009, %v2005
  %v2130 = vpack.c.b16 %v2010, %v2006
  %v2131 = vpack.c.b16 %v2011, %v2007
  %v2132 = vpack.c.b16 %v2016, %v2012
  %v2133 = vpack.c.b16 %v2017, %v2013
  %v2134 = vpack.c.b16 %v2018, %v2014
  %v2135 = vpack.c.b16 %v2019, %v2015
  %v2136 = vpack.c.b16 %v2024, %v2020
  %v2137 = vpack.c.b16 %v2025, %v2021
  %v2138 = vpack.c.b16 %v2026, %v2022
  %v2139 = vpack.c.b16 %v2027, %v2023
  %v2140 = vpack.c.b16 %v2032, %v2028
  %v2141 = vpack.c.b16 %v2033, %v2029
  %v2142 = vpack.c.b16 %v2034, %v2030
  %v2143 = vpack.c.b16 %v2035, %v2031
  %v2144 = vpack.c.b16 %v2040, %v2036
  %v2145 = vpack.c.b16 %v2041, %v2037
  %v2146 = vpack.c.b16 %v2042, %v2038
  %v2147 = vpack.c.b16 %v2043, %v2039
  %v2148 = vpack.c.b16 %v2048, %v2044
  %v2149 = vpack.c.b16 %v2049, %v2045
  %v2150 = vpack.c.b16 %v2050, %v2046
  %v2151 = vpack.c.b16 %v2051, %v2047
  %v2152 = vpack.c.b16 %v2052, %v2052
  %v2153 = vpack.c.b16 %v2053, %v2053
  %v2154 = vpack.c.b16 %v2054, %v2054
  %v2155 = vpack.c.b16 %v2055, %v2055
  %vm2252 = vcmask 64512
  %v2254 = vsel %vm2252, %v1624, 0
  %vm2256 = vcmask 1043456
  %v2258 = vsel %vm2256, %v2152, 0
  %v2261 = vsel %vm2256, %v2153, 0
  %v2264 = vsel %vm2256, %v2154, 0
  %v2267 = vsel %vm2256, %v2155, 0
  %2269 = vmatprep.subr.bf16.mxu0 %v2057
  %2270 = vmatpush1.bf16.msra.mxu0 %v2056
  %2271 = vmatprep.subr.bf16.mxu0 %v2061
  %2272 = vmatpush1.bf16.msra.mxu0 %v2060
  %2273 = vmatprep.subr.bf16.mxu0 %v2065
  %2274 = vmatpush1.bf16.msra.mxu0 %v2064
  %2275 = vmatprep.subr.bf16.mxu0 %v2069
  %2276 = vmatpush1.bf16.msra.mxu0 %v2068
  %2277 = vmatprep.subr.bf16.mxu0 %v2073
  %2278 = vmatpush1.bf16.msra.mxu0 %v2072
  %2279 = vmatprep.subr.bf16.mxu0 %v2077
  %2280 = vmatpush1.bf16.msra.mxu0 %v2076
  %2281 = vmatprep.subr.bf16.mxu0 %v2081
  %2282 = vmatpush1.bf16.msra.mxu0 %v2080
  %2283 = vmatprep.subr.bf16.mxu0 %v2085
  %2284 = vmatpush1.bf16.msra.mxu0 %v2084
  %2285 = vmatprep.subr.bf16.mxu0 %v2089
  %2286 = vmatpush1.bf16.msra.mxu0 %v2088
  %2287 = vmatprep.subr.bf16.mxu0 %v2093
  %2288 = vmatpush1.bf16.msra.mxu0 %v2092
  %2289 = vmatprep.subr.bf16.mxu0 %v2097
  %2290 = vmatpush1.bf16.msra.mxu0 %v2096
  %2291 = vmatprep.subr.bf16.mxu0 %v2101
  %2292 = vmatpush1.bf16.msra.mxu0 %v2100
  %2293 = vmatprep.subr.bf16.mxu0 %v2105
  %2294 = vmatpush1.bf16.msra.mxu0 %v2104
  %2295 = vmatprep.subr.bf16.mxu0 %v2109
  %2296 = vmatpush1.bf16.msra.mxu0 %v2108
  %2297 = vmatprep.subr.bf16.mxu0 %v2113
  %2298 = vmatpush1.bf16.msra.mxu0 %v2112
  %2299 = vmatprep.subr.bf16.mxu0 %v2117
  %2300 = vmatpush1.bf16.msra.mxu0 %v2116
  %2301 = vmatprep.mubr.bf16.mxu0 %v1622
  %2302 = vmatmul.mubr.bf16.gmra.mrb[0].mxu0 %v1621
  %v2303 = vpop.f32.mrb[0].mxu0
  %v2304 = vadd.f32 %v1749, %v2303
  %v2305 = vpop.f32.mrb[0].mxu0
  %v2306 = vadd.f32 %v1753, %v2305
  %v2307 = vpop.f32.mrb[0].mxu0
  %v2308 = vadd.f32 %v1749, %v2307
  %v2309 = vpop.f32.mrb[0].mxu0
  %v2310 = vadd.f32 %v1753, %v2309
  %2311 = vdwg.mxu0
  %2312 = vmatprep.subr.bf16.mxu0 %v2121
  %2313 = vmatpush1.bf16.msra.mxu0 %v2120
  %2314 = vmatprep.subr.bf16.mxu0 %v2125
  %2315 = vmatpush1.bf16.msra.mxu0 %v2124
  %2316 = vmatprep.subr.bf16.mxu0 %v2129
  %2317 = vmatpush1.bf16.msra.mxu0 %v2128
  %2318 = vmatprep.subr.bf16.mxu0 %v2133
  %2319 = vmatpush1.bf16.msra.mxu0 %v2132
  %2320 = vmatprep.subr.bf16.mxu0 %v2137
  %2321 = vmatpush1.bf16.msra.mxu0 %v2136
  %2322 = vmatprep.subr.bf16.mxu0 %v2141
  %2323 = vmatpush1.bf16.msra.mxu0 %v2140
  %2324 = vmatprep.subr.bf16.mxu0 %v2145
  %2325 = vmatpush1.bf16.msra.mxu0 %v2144
  %2326 = vmatprep.subr.bf16.mxu0 %v2149
  %2327 = vmatpush1.bf16.msra.mxu0 %v2148
  %2328 = vmatprep.subr.bf16.mxu0 %v2261
  %2329 = vmatpush1.bf16.msra.mxu0 %v2258
  %2330 = vmatprep.subr.bf16.mxu0 0
  %2331 = vmatpush1.bf16.msra.mxu0 0
  %2332 = vmatprep.subr.bf16.mxu0 0
  %2333 = vmatpush1.bf16.msra.mxu0 0
  %2334 = vmatprep.subr.bf16.mxu0 0
  %2335 = vmatpush1.bf16.msra.mxu0 0
  %2336 = vmatprep.subr.bf16.mxu0 0
  %2337 = vmatpush1.bf16.msra.mxu0 0
  %2338 = vmatprep.subr.bf16.mxu0 0
  %2339 = vmatpush1.bf16.msra.mxu0 0
  %2340 = vmatprep.subr.bf16.mxu0 0
  %2341 = vmatpush1.bf16.msra.mxu0 0
  %2342 = vmatprep.subr.bf16.mxu0 0
  %2343 = vmatpush1.bf16.msra.mxu0 0
  %2344 = vmatprep.mubr.bf16.mxu0 %v2254
  %2345 = vmatmul.mubr.bf16.gmra.mrb[0].mxu0 %v1623
  %v2346 = vpop.f32.mrb[0].mxu0
  %v2347 = vadd.f32 %v2304, %v2346
  %v2348 = vpop.f32.mrb[0].mxu0
  %v2349 = vadd.f32 %v2306, %v2348
  %v2350 = vpop.f32.mrb[0].mxu0
  %v2351 = vadd.f32 %v2308, %v2350
  %v2352 = vpop.f32.mrb[0].mxu0
  %v2353 = vadd.f32 %v2310, %v2352
  %2354 = vdwg.mxu0
  %2355 = vmatprep.subr.bf16.mxu0 %v2059
  %2356 = vmatpush1.bf16.msra.mxu0 %v2058
  %2357 = vmatprep.subr.bf16.mxu0 %v2063
  %2358 = vmatpush1.bf16.msra.mxu0 %v2062
  %2359 = vmatprep.subr.bf16.mxu0 %v2067
  %2360 = vmatpush1.bf16.msra.mxu0 %v2066
  %2361 = vmatprep.subr.bf16.mxu0 %v2071
  %2362 = vmatpush1.bf16.msra.mxu0 %v2070
  %2363 = vmatprep.subr.bf16.mxu0 %v2075
  %2364 = vmatpush1.bf16.msra.mxu0 %v2074
  %2365 = vmatprep.subr.bf16.mxu0 %v2079
  %2366 = vmatpush1.bf16.msra.mxu0 %v2078
  %2367 = vmatprep.subr.bf16.mxu0 %v2083
  %2368 = vmatpush1.bf16.msra.mxu0 %v2082
  %2369 = vmatprep.subr.bf16.mxu0 %v2087
  %2370 = vmatpush1.bf16.msra.mxu0 %v2086
  %2371 = vmatprep.subr.bf16.mxu0 %v2091
  %2372 = vmatpush1.bf16.msra.mxu0 %v2090
  %2373 = vmatprep.subr.bf16.mxu0 %v2095
  %2374 = vmatpush1.bf16.msra.mxu0 %v2094
  %2375 = vmatprep.subr.bf16.mxu0 %v2099
  %2376 = vmatpush1.bf16.msra.mxu0 %v2098
  %2377 = vmatprep.subr.bf16.mxu0 %v2103
  %2378 = vmatpush1.bf16.msra.mxu0 %v2102
  %2379 = vmatprep.subr.bf16.mxu0 %v2107
  %2380 = vmatpush1.bf16.msra.mxu0 %v2106
  %2381 = vmatprep.subr.bf16.mxu0 %v2111
  %2382 = vmatpush1.bf16.msra.mxu0 %v2110
  %2383 = vmatprep.subr.bf16.mxu0 %v2115
  %2384 = vmatpush1.bf16.msra.mxu0 %v2114
  %2385 = vmatprep.subr.bf16.mxu0 %v2119
  %2386 = vmatpush1.bf16.msra.mxu0 %v2118
  %2387 = vmatprep.mubr.bf16.mxu0 %v1622
  %2388 = vmatmul.mubr.bf16.gmra.mrb[0].mxu0 %v1621
  %v2389 = vpop.f32.mrb[0].mxu0
  %v2390 = vadd.f32 %v1757, %v2389
  %v2391 = vpop.f32.mrb[0].mxu0
  %v2392 = vadd.f32 %v1761, %v2391
  %v2393 = vpop.f32.mrb[0].mxu0
  %v2394 = vadd.f32 %v1757, %v2393
  %v2395 = vpop.f32.mrb[0].mxu0
  %v2396 = vadd.f32 %v1761, %v2395
  %2397 = vdwg.mxu0
  %2398 = vmatprep.subr.bf16.mxu0 %v2123
  %2399 = vmatpush1.bf16.msra.mxu0 %v2122
  %2400 = vmatprep.subr.bf16.mxu0 %v2127
  %2401 = vmatpush1.bf16.msra.mxu0 %v2126
  %2402 = vmatprep.subr.bf16.mxu0 %v2131
  %2403 = vmatpush1.bf16.msra.mxu0 %v2130
  %2404 = vmatprep.subr.bf16.mxu0 %v2135
  %2405 = vmatpush1.bf16.msra.mxu0 %v2134
  %2406 = vmatprep.subr.bf16.mxu0 %v2139
  %2407 = vmatpush1.bf16.msra.mxu0 %v2138
  %2408 = vmatprep.subr.bf16.mxu0 %v2143
  %2409 = vmatpush1.bf16.msra.mxu0 %v2142
  %2410 = vmatprep.subr.bf16.mxu0 %v2147
  %2411 = vmatpush1.bf16.msra.mxu0 %v2146
  %2412 = vmatprep.subr.bf16.mxu0 %v2151
  %2413 = vmatpush1.bf16.msra.mxu0 %v2150
  %2414 = vmatprep.subr.bf16.mxu0 %v2267
  %2415 = vmatpush1.bf16.msra.mxu0 %v2264
  %2416 = vmatprep.subr.bf16.mxu0 0
  %2417 = vmatpush1.bf16.msra.mxu0 0
  %2418 = vmatprep.subr.bf16.mxu0 0
  %2419 = vmatpush1.bf16.msra.mxu0 0
  %2420 = vmatprep.subr.bf16.mxu0 0
  %2421 = vmatpush1.bf16.msra.mxu0 0
  %2422 = vmatprep.subr.bf16.mxu0 0
  %2423 = vmatpush1.bf16.msra.mxu0 0
  %2424 = vmatprep.subr.bf16.mxu0 0
  %2425 = vmatpush1.bf16.msra.mxu0 0
  %2426 = vmatprep.subr.bf16.mxu0 0
  %2427 = vmatpush1.bf16.msra.mxu0 0
  %2428 = vmatprep.subr.bf16.mxu0 0
  %2429 = vmatpush1.bf16.msra.mxu0 0
  %2430 = vmatprep.mubr.bf16.mxu0 %v2254
  %2431 = vmatmul.mubr.bf16.gmra.mrb[0].mxu0 %v1623
  %v2432 = vpop.f32.mrb[0].mxu0
  %v2433 = vadd.f32 %v2390, %v2432
  %v2434 = vpop.f32.mrb[0].mxu0
  %v2435 = vadd.f32 %v2392, %v2434
  %v2436 = vpop.f32.mrb[0].mxu0
  %v2437 = vadd.f32 %v2394, %v2436
  %v2438 = vpop.f32.mrb[0].mxu0
  %v2439 = vadd.f32 %v2396, %v2438
  %2440 = vdwg.mxu0
  %v2441 = vmax.f32 %v2347, 0.0
  %v2442 = vmax.f32 %v2349, 0.0
  %v2443 = vmax.f32 %v2433, 0.0
  %v2444 = vmax.f32 %v2435, 0.0
  %v2445 = vmax.f32 %v2351, 0.0
  %v2446 = vmax.f32 %v2353, 0.0
  %v2447 = vmax.f32 %v2437, 0.0
  %v2448 = vmax.f32 %v2439, 0.0
  %v2449 = vld [vmem:[%s5] sm:$0xf]
  %v2450 = vunpack.c.l.bf16 %v2449
  %v2452 = vlaneseq
  %v2453 = vshrl.u32 %v2452, 7
  %v2454 = vsub.s32 0, %v2453
  %v2455 = vrot.slane %v2450, %v2454
  %v2456 = vlaneseq
  %v2457 = vshrl.u32 %v2456, 7
  %v2458 = vsub.s32 2, %v2457
  %v2459 = vrot.slane %v2450, %v2458
  %v2460 = vlaneseq
  %v2461 = vshrl.u32 %v2460, 7
  %v2462 = vsub.s32 4, %v2461
  %v2463 = vrot.slane %v2450, %v2462
  %v2464 = vlaneseq
  %v2465 = vshrl.u32 %v2464, 7
  %v2466 = vsub.s32 6, %v2465
  %v2467 = vrot.slane %v2450, %v2466
  %v2472 = vlaneseq
  %v2473 = vshrl.u32 %v2472, 7
  %v2474 = vsub.s32 0, %v2473
  %v2475 = vrot.slane %v2455, %v2474
  %v2476 = vlaneseq
  %v2477 = vshrl.u32 %v2476, 7
  %v2478 = vsub.s32 0, %v2477
  %v2479 = vrot.slane %v2459, %v2478
  %v2480 = vlaneseq
  %v2481 = vshrl.u32 %v2480, 7
  %v2482 = vsub.s32 0, %v2481
  %v2483 = vrot.slane %v2463, %v2482
  %v2484 = vlaneseq
  %v2485 = vshrl.u32 %v2484, 7
  %v2486 = vsub.s32 0, %v2485
  %v2487 = vrot.slane %v2467, %v2486
  %v2488 = vmul.f32 %v2441, %v2475
  %v2489 = vmul.f32 %v2442, %v2479
  %v2490 = vmul.f32 %v2443, %v2483
  %v2491 = vmul.f32 %v2444, %v2487
  %v2492 = vmul.f32 %v2445, %v2475
  %v2493 = vmul.f32 %v2446, %v2479
  %v2494 = vmul.f32 %v2447, %v2483
  %v2495 = vmul.f32 %v2448, %v2487
  %v2496 = vadd.f32 %v2488, %v2489
  %v2497 = vadd.f32 %v2496, %v2490
  %v2498 = vsel %vm2252, %v2491, 0.0
  %v2499 = vadd.f32 %v2497, %v2498
  %2500 = vadd.xlane.f32.xlu0 %v2499
  %v2501 = vpop.xlane.xlu0 %2500
  %v2502 = vadd.f32 %v2492, %v2493
  %v2503 = vadd.f32 %v2502, %v2494
  %v2504 = vsel %vm2252, %v2495, 0.0
  %v2505 = vadd.f32 %v2503, %v2504
  %2506 = vadd.xlane.f32.xlu0 %v2505
  %v2507 = vpop.xlane.xlu0 %2506
  %v2508 = vld [vmem:[#allocation2] sm:$0x1]
  %v2509 = vunpack.c.l.bf16 %v2508
  %v2510 = vlaneseq
  %v2511 = vshrl.u32 %v2510, 7
  %v2512 = vsub.s32 0, %v2511
  %v2513 = vrot.slane %v2509, %v2512
  %v2514 = vadd.f32 %v2501, %v2513
  %v2515 = vadd.f32 %v2507, %v2513
  %vm2516 = vcmask 7168
  %2517 = vst.msk [vmem:[%s7] sm:$0xff] %vm2516, %v2514
  %2518 = vst.msk [vmem:[%s7 + $0x8] sm:$0xff] %vm2516, %v2515
  // Predicated region
  $region30: #{tpu_custom_call.1} parent=0 // pred_check
    _
  $region31: #{tpu_custom_call.1} parent=0 // pred_check_branch
    %2520 = sbr.rel (0) target = $region33
  $region32: #{tpu_custom_call.1} parent=0 // pred_region
    _
  $region33: #{tpu_custom_call.1} parent=0 // pred_fallthru
    _
  // Predicated region
  $region34: #{tpu_custom_call.1} parent=0 // pred_check
    _
  $region35: #{tpu_custom_call.1} parent=0 // pred_check_branch
    %2522 = sbr.rel (0) target = $region37
  $region36: #{tpu_custom_call.1} parent=0 // pred_region
    _
  $region37: #{tpu_custom_call.1} parent=0 // pred_fallthru
    _

</llo_original>
